<compile_context>
chip_gen: v5e
topology: v5e:2x2
jax: 0.10.0
libtpu: 0.0.40
codegen_flags: <defaults>
</compile_context>

<pallas_src>
import functools

import jax
import jax.numpy as jnp
from jax.experimental import pallas as pl
from jax.experimental.pallas import tpu as pltpu


def _band_matrix(length: int, win: int) -> jnp.ndarray:
    """B[i, j] = 1 iff input index j falls inside the conv window centered
    (with zero padding win//2) at output index i. Matches nnf.conv3d."""
    pad = win // 2
    idx = jnp.arange(length)
    d = idx[None, :] - idx[:, None] + pad            # window-relative offset
    return ((d >= 0) & (d < win)).astype(jnp.float32)


def ncc_pallas(I, J, win: int = 9, eps: float = 1e-5):
    """Pallas implementation of NCC.forward. I, J: (N, 1, D, H, W)."""
    N, C, D, H, W = I.shape
    assert C == 1, "conv weight has in_channels=1, so C must be 1"

    HW = H * W
    # Lane-dense layout: (N, D, H*W).
    Ix = I[:, 0].astype(jnp.float32).reshape(N, D, HW)
    Jx = J[:, 0].astype(jnp.float32).reshape(N, D, HW)

    Bd = _band_matrix(D, win)
    Bh = Bd if H == D else _band_matrix(H, win)
    Bw = Bd if W == D else (Bh if W == H else _band_matrix(W, win))

    # Fused H+W box-sum operator acting on the flattened (h*W + w) lane dim:
    #   y_flat = x_flat @ kron(Bh, Bw)^T
    M_hw = jnp.kron(Bh, Bw).T                        # (H*W, H*W)
    # D-axis box-sum operator for the 5-way stacked statistics:
    Bd5 = jnp.kron(jnp.eye(5, dtype=jnp.float32), Bd)  # (5*D, 5*D)

    win_size = float(win) ** 3
    inv_win = 1.0 / win_size

    def kernel(i_ref, j_ref, mhw_ref, bd5_ref, out_ref):
        Iv = i_ref[...]                              # (D, HW) f32
        Jv = j_ref[...]

        # Stack the five statistics along the sublane (non-contracted) dim so
        # a single pair of matmuls box-filters all of them at once.
        stats = jnp.concatenate(
            [Iv, Jv, Iv * Iv, Jv * Jv, Iv * Jv], axis=0)   # (5D, HW)

        # H+W pass (lane-dim contraction) then D pass (sublane contraction).
        s_hw = jnp.dot(stats, mhw_ref[...],
                       preferred_element_type=jnp.float32)  # (5D, HW)
        sums = jnp.dot(bd5_ref[...], s_hw,
                       preferred_element_type=jnp.float32)  # (5D, HW)

        I_sum = sums[0 * D:1 * D]
        J_sum = sums[1 * D:2 * D]
        I2_sum = sums[2 * D:3 * D]
        J2_sum = sums[3 * D:4 * D]
        IJ_sum = sums[4 * D:5 * D]

        # Simplified (exactly equivalent) NCC algebra.
        cross = IJ_sum - I_sum * J_sum * inv_win
        I_var = I2_sum - I_sum * I_sum * inv_win
        J_var = J2_sum - J_sum * J_sum * inv_win

        cc = cross * cross / (I_var * J_var + eps)

        # Finish the spatial reduction in-kernel: one scalar per batch.
        cc_sum = jnp.sum(cc, axis=1, keepdims=True)   # (D, 1)
        cc_sum = jnp.sum(cc_sum, axis=0, keepdims=True)  # (1, 1)
        out_ref[...] = cc_sum.reshape(1, 1, 1)

    partial = pl.pallas_call(
        kernel,
        out_shape=jax.ShapeDtypeStruct((N, 1, 1), jnp.float32),
        grid_spec=pltpu.PrefetchScalarGridSpec(
            num_scalar_prefetch=0,
            grid=(N,),
            in_specs=[
                pl.BlockSpec((None, D, HW), lambda n: (n, 0, 0)),
                pl.BlockSpec((None, D, HW), lambda n: (n, 0, 0)),
                pl.BlockSpec((HW, HW), lambda n: (0, 0)),
                pl.BlockSpec((5 * D, 5 * D), lambda n: (0, 0)),
            ],
            out_specs=pl.BlockSpec((1, 1, 1), lambda n: (n, 0, 0)),
        ),
        compiler_params=pltpu.CompilerParams(
            dimension_semantics=("parallel",),
            vmem_limit_bytes=64 * 1024 * 1024,
        ),
    )(Ix, Jx, M_hw, Bd5)

    total = jnp.sum(partial)
    n_elems = N * C * D * H * W
    return -total / n_elems


def ncc_reference(I, J, win: int = 9, eps: float = 1e-5):
    """Pure-JAX reference mirroring the PyTorch module (real 3D conv)."""
    I = I.astype(jnp.float32)
    J = J.astype(jnp.float32)
    w = jnp.ones((1, 1, win, win, win), jnp.float32)
    pad = win // 2

    def conv(x):
        return jax.lax.conv_general_dilated(
            x, w, window_strides=(1, 1, 1),
            padding=[(pad, pad)] * 3,
            dimension_numbers=("NCDHW", "OIDHW", "NCDHW"))

    I2, J2, IJ = I * I, J * J, I * J
    I_sum, J_sum = conv(I), conv(J)
    I2_sum, J2_sum, IJ_sum = conv(I2), conv(J2), conv(IJ)

    win_size = float(win) ** 3
    u_I = I_sum / win_size
    u_J = J_sum / win_size
    cross = IJ_sum - u_J * I_sum - u_I * J_sum + u_I * u_J * win_size
    I_var = I2_sum - 2.0 * u_I * I_sum + u_I * u_I * win_size
    J_var = J2_sum - 2.0 * u_J * J_sum + u_J * u_J * win_size
    cc = cross * cross / (I_var * J_var + eps)
    return -1.0 * jnp.mean(cc)


if __name__ == "__main__":
    key = jax.random.PRNGKey(0)
    k1, k2 = jax.random.split(key)

    N, C, D, H, W = 2, 1, 16, 16, 16
    WIN, EPS = 9, 1e-5

    I = jax.random.normal(k1, (N, C, D, H, W), dtype=jnp.float32)
    J = jax.random.normal(k2, (N, C, D, H, W), dtype=jnp.float32)

    ncc_fn = jax.jit(functools.partial(ncc_pallas, win=WIN, eps=EPS))
    out = ncc_fn(I, J)
    out = jax.block_until_ready(out)

    ref = jax.block_until_ready(ncc_reference(I, J, win=WIN, eps=EPS))

    assert jnp.isfinite(out), "kernel produced non-finite output"
    assert jnp.allclose(out, ref, rtol=1e-3, atol=1e-3), (
        f"mismatch: pallas={float(out)} ref={float(ref)}")

    print("KERNEL_OK")
</pallas_src>

<mosaic_0001>
module attributes {stable_mosaic.version = 11 : i64} {
  func.func @kernel(%arg0: i32, %arg1: memref<1x16x256xf32, #tpu.memory_space<vmem>>, %arg2: memref<1x16x256xf32, #tpu.memory_space<vmem>>, %arg3: memref<256x256xf32, #tpu.memory_space<vmem>>, %arg4: memref<80x80xf32, #tpu.memory_space<vmem>>, %arg5: memref<1x1x1xf32, #tpu.memory_space<vmem>>) attributes {dimension_semantics = [#tpu.dimension_semantics<parallel>], iteration_bounds = array<i64: 2>, scalar_prefetch = 0 : i64, scratch_operands = 0 : i64, tpu.core_type = #tpu.core_type<tc>, window_params = [{transform_indices = @transform_0, window_bounds = array<i64: 1, 16, 256>}, {transform_indices = @transform_1, window_bounds = array<i64: 1, 16, 256>}, {pipeline_mode = #tpu.pipeline_mode<synchronous>, transform_indices = @transform_2, window_bounds = array<i64: 256, 256>}, {pipeline_mode = #tpu.pipeline_mode<synchronous>, transform_indices = @transform_3, window_bounds = array<i64: 80, 80>}, {transform_indices = @transform_4, window_bounds = array<i64: 1, 1, 1>}]} {
    %c0 = arith.constant 0 : index
    %c0_0 = arith.constant 0 : index
    %c0_1 = arith.constant 0 : index
    %0 = vector.load %arg1[%c0, %c0_0, %c0_1] : memref<1x16x256xf32, #tpu.memory_space<vmem>>, vector<1x16x256xf32>
    %1 = vector.shape_cast %0 : vector<1x16x256xf32> to vector<16x256xf32>
    %c0_2 = arith.constant 0 : index
    %c0_3 = arith.constant 0 : index
    %c0_4 = arith.constant 0 : index
    %2 = vector.load %arg2[%c0_2, %c0_3, %c0_4] : memref<1x16x256xf32, #tpu.memory_space<vmem>>, vector<1x16x256xf32>
    %3 = vector.shape_cast %2 : vector<1x16x256xf32> to vector<16x256xf32>
    %4 = arith.mulf %1, %1 : vector<16x256xf32>
    %5 = arith.mulf %3, %3 : vector<16x256xf32>
    %6 = arith.mulf %1, %3 : vector<16x256xf32>
    %7 = tpu.concatenate %1, %3, %4, %5, %6 in 0 : vector<16x256xf32>, vector<16x256xf32>, vector<16x256xf32>, vector<16x256xf32>, vector<16x256xf32> -> vector<80x256xf32>
    %c0_5 = arith.constant 0 : index
    %c0_6 = arith.constant 0 : index
    %8 = vector.load %arg3[%c0_5, %c0_6] : memref<256x256xf32, #tpu.memory_space<vmem>>, vector<256x256xf32>
    %cst = arith.constant dense<0.000000e+00> : vector<80x256xf32>
    %9 = tpu.matmul %7, %8, %cst {dimension_numbers = #tpu.dot_dimension_numbers<[1], [0], [0], [1], [0, 0, 1, 1], [], []>} : vector<80x256xf32>, vector<256x256xf32>, vector<80x256xf32> -> vector<80x256xf32>
    %c0_7 = arith.constant 0 : index
    %c0_8 = arith.constant 0 : index
    %10 = vector.load %arg4[%c0_7, %c0_8] : memref<80x80xf32, #tpu.memory_space<vmem>>, vector<80x80xf32>
    %cst_9 = arith.constant dense<0.000000e+00> : vector<80x256xf32>
    %11 = tpu.matmul %10, %9, %cst_9 {dimension_numbers = #tpu.dot_dimension_numbers<[1], [0], [0], [1], [0, 0, 1, 1], [], []>} : vector<80x80xf32>, vector<80x256xf32>, vector<80x256xf32> -> vector<80x256xf32>
    %12 = vector.extract_strided_slice %11 {offsets = [0, 0], sizes = [16, 256], strides = [1, 1]} : vector<80x256xf32> to vector<16x256xf32>
    %13 = vector.extract_strided_slice %11 {offsets = [16, 0], sizes = [16, 256], strides = [1, 1]} : vector<80x256xf32> to vector<16x256xf32>
    %14 = vector.extract_strided_slice %11 {offsets = [32, 0], sizes = [16, 256], strides = [1, 1]} : vector<80x256xf32> to vector<16x256xf32>
    %15 = vector.extract_strided_slice %11 {offsets = [48, 0], sizes = [16, 256], strides = [1, 1]} : vector<80x256xf32> to vector<16x256xf32>
    %16 = vector.extract_strided_slice %11 {offsets = [64, 0], sizes = [16, 256], strides = [1, 1]} : vector<80x256xf32> to vector<16x256xf32>
    %17 = arith.mulf %12, %13 : vector<16x256xf32>
    %cst_10 = arith.constant 0.00137174211 : f32
    %18 = vector.broadcast %cst_10 : f32 to vector<16x256xf32>
    %19 = arith.mulf %17, %18 : vector<16x256xf32>
    %20 = arith.subf %16, %19 : vector<16x256xf32>
    %21 = arith.mulf %12, %12 : vector<16x256xf32>
    %cst_11 = arith.constant 0.00137174211 : f32
    %22 = vector.broadcast %cst_11 : f32 to vector<16x256xf32>
    %23 = arith.mulf %21, %22 : vector<16x256xf32>
    %24 = arith.subf %14, %23 : vector<16x256xf32>
    %25 = arith.mulf %13, %13 : vector<16x256xf32>
    %cst_12 = arith.constant 0.00137174211 : f32
    %26 = vector.broadcast %cst_12 : f32 to vector<16x256xf32>
    %27 = arith.mulf %25, %26 : vector<16x256xf32>
    %28 = arith.subf %15, %27 : vector<16x256xf32>
    %29 = arith.mulf %20, %20 : vector<16x256xf32>
    %30 = arith.mulf %24, %28 : vector<16x256xf32>
    %cst_13 = arith.constant 9.99999974E-6 : f32
    %31 = vector.broadcast %cst_13 : f32 to vector<16x256xf32>
    %32 = arith.addf %30, %31 : vector<16x256xf32>
    %33 = arith.divf %29, %32 : vector<16x256xf32>
    %cst_14 = arith.constant dense<0.000000e+00> : vector<16xf32>
    %34 = vector.multi_reduction <add>, %33, %cst_14 [1] : vector<16x256xf32> to vector<16xf32>
    %35 = vector.shape_cast %34 : vector<16xf32> to vector<16x1xf32>
    %cst_15 = arith.constant dense<0.000000e+00> : vector<1xf32>
    %36 = vector.multi_reduction <add>, %35, %cst_15 [0] : vector<16x1xf32> to vector<1xf32>
    %37 = vector.shape_cast %36 : vector<1xf32> to vector<1x1xf32>
    %38 = vector.shape_cast %37 : vector<1x1xf32> to vector<1x1x1xf32>
    %c0_16 = arith.constant 0 : index
    %c0_17 = arith.constant 0 : index
    %c0_18 = arith.constant 0 : index
    %39 = vector.load %arg5[%c0_16, %c0_17, %c0_18] : memref<1x1x1xf32, #tpu.memory_space<vmem>>, vector<1x1x1xf32>
    tpu.vector_store %arg5[%c0_16, %c0_17, %c0_18], %38 {strides = array<i32>} : memref<1x1x1xf32, #tpu.memory_space<vmem>>, vector<1x1x1xf32>,
    return
  }
  func.func @transform_0(%arg0: i32) -> (i32, i32, i32) {
    %c0_i32 = arith.constant 0 : i32
    %c0_i32_0 = arith.constant 0 : i32
    %c0_i32_1 = arith.constant 0 : i32
    return %arg0, %c0_i32, %c0_i32_0 : i32, i32, i32
  }
  func.func @transform_1(%arg0: i32) -> (i32, i32, i32) {
    %c0_i32 = arith.constant 0 : i32
    %c0_i32_0 = arith.constant 0 : i32
    %c0_i32_1 = arith.constant 0 : i32
    return %arg0, %c0_i32, %c0_i32_0 : i32, i32, i32
  }
  func.func @transform_2(%arg0: i32) -> (i32, i32) {
    %c0_i32 = arith.constant 0 : i32
    %c0_i32_0 = arith.constant 0 : i32
    %c0_i32_1 = arith.constant 0 : i32
    return %c0_i32, %c0_i32_0 : i32, i32
  }
  func.func @transform_3(%arg0: i32) -> (i32, i32) {
    %c0_i32 = arith.constant 0 : i32
    %c0_i32_0 = arith.constant 0 : i32
    %c0_i32_1 = arith.constant 0 : i32
    return %c0_i32, %c0_i32_0 : i32, i32
  }
  func.func @transform_4(%arg0: i32) -> (i32, i32, i32) {
    %c0_i32 = arith.constant 0 : i32
    %c0_i32_0 = arith.constant 0 : i32
    %c0_i32_1 = arith.constant 0 : i32
    return %arg0, %c0_i32, %c0_i32_0 : i32, i32, i32
  }
}

</mosaic_0001>

<llo_original>
// kernel: squeeze.2
$region0: #{squeeze.2}
  %s0 = inlined_call_operand.vmem [shape: f32[2,1,16,16,16], index: 0, kind: input, shape index: {}]
  %s1 = inlined_call_operand.vmem [shape: f32[2,16,256], index: 1, kind: output, shape index: {}]
  %v2 = vld [vmem:[%s0] ss:$8 sm:$0xf]
  %v3 = vld [vmem:[%s0] ss:$8 sm:$0xf0]
  %vm4 = vcmask 1047556
  %v5 = vsel %vm4, %v3, %v2
  %vm6 = vcmask 130048
  %7 = vst.msk [vmem:[%s1] ss:$8 sm:$0x3] %vm6, %v5
  %s8 = scalar_lea.vmem %s1, 4294967281
  %9 = vst.msk [vmem:[%s8] ss:$8 sm:$0xc] %vm6, %v5
  %s10 = scalar_lea.vmem %s1, 4294967266
  %11 = vst.msk [vmem:[%s10] ss:$8 sm:$0x30] %vm6, %v5
  %s12 = scalar_lea.vmem %s1, 4294967251
  %13 = vst.msk [vmem:[%s12] ss:$8 sm:$0xc0] %vm6, %v5
  %s14 = scalar_lea.vmem %s0, 64
  %v15 = vld [vmem:[%s14] ss:$8 sm:$0xf]
  %s16 = scalar_lea.vmem %s0, 64
  %v17 = vld [vmem:[%s16] ss:$8 sm:$0xf0]
  %vm18 = vcmask 1047556
  %v19 = vsel %vm18, %v17, %v15
  %vm20 = vcmask 130048
  %s21 = scalar_lea.vmem %s1, 4
  %22 = vst.msk [vmem:[%s21] ss:$8 sm:$0x3] %vm20, %v19
  %s23 = scalar_lea.vmem %s1, 4294967285
  %24 = vst.msk [vmem:[%s23] ss:$8 sm:$0xc] %vm20, %v19
  %s25 = scalar_lea.vmem %s1, 4294967270
  %26 = vst.msk [vmem:[%s25] ss:$8 sm:$0x30] %vm20, %v19
  %s27 = scalar_lea.vmem %s1, 4294967255
  %28 = vst.msk [vmem:[%s27] ss:$8 sm:$0xc0] %vm20, %v19
  %s29 = scalar_lea.vmem %s0, 128
  %v30 = vld [vmem:[%s29] ss:$8 sm:$0xf]
  %s31 = scalar_lea.vmem %s0, 128
  %v32 = vld [vmem:[%s31] ss:$8 sm:$0xf0]
  %vm33 = vcmask 1047556
  %v34 = vsel %vm33, %v32, %v30
  %vm35 = vcmask 130048
  %s36 = scalar_lea.vmem %s1, 16
  %37 = vst.msk [vmem:[%s36] ss:$8 sm:$0x3] %vm35, %v34
  %s38 = scalar_lea.vmem %s1, 1
  %39 = vst.msk [vmem:[%s38] ss:$8 sm:$0xc] %vm35, %v34
  %s40 = scalar_lea.vmem %s1, 4294967282
  %41 = vst.msk [vmem:[%s40] ss:$8 sm:$0x30] %vm35, %v34
  %s42 = scalar_lea.vmem %s1, 4294967267
  %43 = vst.msk [vmem:[%s42] ss:$8 sm:$0xc0] %vm35, %v34
  %s44 = scalar_lea.vmem %s0, 192
  %v45 = vld [vmem:[%s44] ss:$8 sm:$0xf]
  %s46 = scalar_lea.vmem %s0, 192
  %v47 = vld [vmem:[%s46] ss:$8 sm:$0xf0]
  %vm48 = vcmask 1047556
  %v49 = vsel %vm48, %v47, %v45
  %vm50 = vcmask 130048
  %s51 = scalar_lea.vmem %s1, 20
  %52 = vst.msk [vmem:[%s51] ss:$8 sm:$0x3] %vm50, %v49
  %s53 = scalar_lea.vmem %s1, 5
  %54 = vst.msk [vmem:[%s53] ss:$8 sm:$0xc] %vm50, %v49
  %s55 = scalar_lea.vmem %s1, 4294967286
  %56 = vst.msk [vmem:[%s55] ss:$8 sm:$0x30] %vm50, %v49
  %s57 = scalar_lea.vmem %s1, 4294967271
  %58 = vst.msk [vmem:[%s57] ss:$8 sm:$0xc0] %vm50, %v49
  %s59 = scalar_lea.vmem %s0, 256
  %v60 = vld [vmem:[%s59] ss:$8 sm:$0xf]
  %s61 = scalar_lea.vmem %s0, 256
  %v62 = vld [vmem:[%s61] ss:$8 sm:$0xf0]
  %vm63 = vcmask 1047556
  %v64 = vsel %vm63, %v62, %v60
  %vm65 = vcmask 130048
  %s66 = scalar_lea.vmem %s1, 32
  %67 = vst.msk [vmem:[%s66] ss:$8 sm:$0x3] %vm65, %v64
  %s68 = scalar_lea.vmem %s1, 17
  %69 = vst.msk [vmem:[%s68] ss:$8 sm:$0xc] %vm65, %v64
  %s70 = scalar_lea.vmem %s1, 2
  %71 = vst.msk [vmem:[%s70] ss:$8 sm:$0x30] %vm65, %v64
  %s72 = scalar_lea.vmem %s1, 4294967283
  %73 = vst.msk [vmem:[%s72] ss:$8 sm:$0xc0] %vm65, %v64
  %s74 = scalar_lea.vmem %s0, 320
  %v75 = vld [vmem:[%s74] ss:$8 sm:$0xf]
  %s76 = scalar_lea.vmem %s0, 320
  %v77 = vld [vmem:[%s76] ss:$8 sm:$0xf0]
  %vm78 = vcmask 1047556
  %v79 = vsel %vm78, %v77, %v75
  %vm80 = vcmask 130048
  %s81 = scalar_lea.vmem %s1, 36
  %82 = vst.msk [vmem:[%s81] ss:$8 sm:$0x3] %vm80, %v79
  %s83 = scalar_lea.vmem %s1, 21
  %84 = vst.msk [vmem:[%s83] ss:$8 sm:$0xc] %vm80, %v79
  %s85 = scalar_lea.vmem %s1, 6
  %86 = vst.msk [vmem:[%s85] ss:$8 sm:$0x30] %vm80, %v79
  %s87 = scalar_lea.vmem %s1, 4294967287
  %88 = vst.msk [vmem:[%s87] ss:$8 sm:$0xc0] %vm80, %v79
  %s89 = scalar_lea.vmem %s0, 384
  %v90 = vld [vmem:[%s89] ss:$8 sm:$0xf]
  %s91 = scalar_lea.vmem %s0, 384
  %v92 = vld [vmem:[%s91] ss:$8 sm:$0xf0]
  %vm93 = vcmask 1047556
  %v94 = vsel %vm93, %v92, %v90
  %vm95 = vcmask 130048
  %s96 = scalar_lea.vmem %s1, 48
  %97 = vst.msk [vmem:[%s96] ss:$8 sm:$0x3] %vm95, %v94
  %s98 = scalar_lea.vmem %s1, 33
  %99 = vst.msk [vmem:[%s98] ss:$8 sm:$0xc] %vm95, %v94
  %s100 = scalar_lea.vmem %s1, 18
  %101 = vst.msk [vmem:[%s100] ss:$8 sm:$0x30] %vm95, %v94
  %s102 = scalar_lea.vmem %s1, 3
  %103 = vst.msk [vmem:[%s102] ss:$8 sm:$0xc0] %vm95, %v94
  %s104 = scalar_lea.vmem %s0, 448
  %v105 = vld [vmem:[%s104] ss:$8 sm:$0xf]
  %s106 = scalar_lea.vmem %s0, 448
  %v107 = vld [vmem:[%s106] ss:$8 sm:$0xf0]
  %vm108 = vcmask 1047556
  %v109 = vsel %vm108, %v107, %v105
  %vm110 = vcmask 130048
  %s111 = scalar_lea.vmem %s1, 52
  %112 = vst.msk [vmem:[%s111] ss:$8 sm:$0x3] %vm110, %v109
  %s113 = scalar_lea.vmem %s1, 37
  %114 = vst.msk [vmem:[%s113] ss:$8 sm:$0xc] %vm110, %v109
  %s115 = scalar_lea.vmem %s1, 22
  %116 = vst.msk [vmem:[%s115] ss:$8 sm:$0x30] %vm110, %v109
  %s117 = scalar_lea.vmem %s1, 7
  %118 = vst.msk [vmem:[%s117] ss:$8 sm:$0xc0] %vm110, %v109
  %s119 = scalar_lea.vmem %s0, 7
  %s120 = smov 3
  %v121 = vld [vmem:[%s119] ss:$16 sm:%s120]
  %s122 = scalar_lea.vmem %s0, 7
  %s123 = smov 12
  %v124 = vld [vmem:[%s122] ss:$16 sm:%s123]
  %vm125 = vcmask 1043458
  %v126 = vsel %vm125, %v124, %v121
  %s127 = scalar_lea.vmem %s0, 7
  %s128 = smov 48
  %v129 = vld [vmem:[%s127] ss:$16 sm:%s128]
  %vm130 = vcmask 1045508
  %v131 = vsel %vm130, %v129, %v126
  %s132 = scalar_lea.vmem %s0, 7
  %s133 = smov 192
  %v134 = vld [vmem:[%s132] ss:$16 sm:%s133]
  %vm135 = vcmask 1047558
  %v136 = vsel %vm135, %v134, %v131
  %137 = vrot.lane.b32.xlu0 %v136, 112
  %v138 = vpop.permute.xlu0 %137
  %vm139 = vcmask 1048448
  %140 = vst.msk [vmem:[%s1] sm:$0xff] %vm139, %v138
  %s141 = scalar_lea.vmem %s0, 263
  %s142 = smov 3
  %v143 = vld [vmem:[%s141] ss:$16 sm:%s142]
  %s144 = scalar_lea.vmem %s0, 263
  %s145 = smov 12
  %v146 = vld [vmem:[%s144] ss:$16 sm:%s145]
  %vm147 = vcmask 1043458
  %v148 = vsel %vm147, %v146, %v143
  %s149 = scalar_lea.vmem %s0, 263
  %s150 = smov 48
  %v151 = vld [vmem:[%s149] ss:$16 sm:%s150]
  %vm152 = vcmask 1045508
  %v153 = vsel %vm152, %v151, %v148
  %s154 = scalar_lea.vmem %s0, 263
  %s155 = smov 192
  %v156 = vld [vmem:[%s154] ss:$16 sm:%s155]
  %vm157 = vcmask 1047558
  %v158 = vsel %vm157, %v156, %v153
  %159 = vrot.lane.b32.xlu0 %v158, 112
  %v160 = vpop.permute.xlu0 %159
  %vm161 = vcmask 1048448
  %s162 = scalar_lea.vmem %s1, 32
  %163 = vst.msk [vmem:[%s162] sm:$0xff] %vm161, %v160
  %s164 = scalar_lea.vmem %s0, 15
  %s165 = smov 3
  %v166 = vld [vmem:[%s164] ss:$16 sm:%s165]
  %s167 = scalar_lea.vmem %s0, 15
  %s168 = smov 12
  %v169 = vld [vmem:[%s167] ss:$16 sm:%s168]
  %vm170 = vcmask 1043458
  %v171 = vsel %vm170, %v169, %v166
  %s172 = scalar_lea.vmem %s0, 15
  %s173 = smov 48
  %v174 = vld [vmem:[%s172] ss:$16 sm:%s173]
  %vm175 = vcmask 1045508
  %v176 = vsel %vm175, %v174, %v171
  %s177 = scalar_lea.vmem %s0, 15
  %s178 = smov 192
  %v179 = vld [vmem:[%s177] ss:$16 sm:%s178]
  %vm180 = vcmask 1047558
  %v181 = vsel %vm180, %v179, %v176
  %182 = vrot.lane.b32.xlu0 %v181, 112
  %v183 = vpop.permute.xlu0 %182
  %vm184 = vcmask 1048448
  %s185 = scalar_lea.vmem %s1, 8
  %186 = vst.msk [vmem:[%s185] sm:$0xff] %vm184, %v183
  %s187 = scalar_lea.vmem %s0, 271
  %s188 = smov 3
  %v189 = vld [vmem:[%s187] ss:$16 sm:%s188]
  %s190 = scalar_lea.vmem %s0, 271
  %s191 = smov 12
  %v192 = vld [vmem:[%s190] ss:$16 sm:%s191]
  %vm193 = vcmask 1043458
  %v194 = vsel %vm193, %v192, %v189
  %s195 = scalar_lea.vmem %s0, 271
  %s196 = smov 48
  %v197 = vld [vmem:[%s195] ss:$16 sm:%s196]
  %vm198 = vcmask 1045508
  %v199 = vsel %vm198, %v197, %v194
  %s200 = scalar_lea.vmem %s0, 271
  %s201 = smov 192
  %v202 = vld [vmem:[%s200] ss:$16 sm:%s201]
  %vm203 = vcmask 1047558
  %v204 = vsel %vm203, %v202, %v199
  %205 = vrot.lane.b32.xlu0 %v204, 112
  %v206 = vpop.permute.xlu0 %205
  %vm207 = vcmask 1048448
  %s208 = scalar_lea.vmem %s1, 40
  %209 = vst.msk [vmem:[%s208] sm:$0xff] %vm207, %v206
  %s210 = scalar_lea.vmem %s0, 135
  %s211 = smov 3
  %v212 = vld [vmem:[%s210] ss:$16 sm:%s211]
  %s213 = scalar_lea.vmem %s0, 135
  %s214 = smov 12
  %v215 = vld [vmem:[%s213] ss:$16 sm:%s214]
  %vm216 = vcmask 1043458
  %v217 = vsel %vm216, %v215, %v212
  %s218 = scalar_lea.vmem %s0, 135
  %s219 = smov 48
  %v220 = vld [vmem:[%s218] ss:$16 sm:%s219]
  %vm221 = vcmask 1045508
  %v222 = vsel %vm221, %v220, %v217
  %s223 = scalar_lea.vmem %s0, 135
  %s224 = smov 192
  %v225 = vld [vmem:[%s223] ss:$16 sm:%s224]
  %vm226 = vcmask 1047558
  %v227 = vsel %vm226, %v225, %v222
  %228 = vrot.lane.b32.xlu0 %v227, 112
  %v229 = vpop.permute.xlu0 %228
  %vm230 = vcmask 1048448
  %s231 = scalar_lea.vmem %s1, 16
  %232 = vst.msk [vmem:[%s231] sm:$0xff] %vm230, %v229
  %s233 = scalar_lea.vmem %s0, 391
  %s234 = smov 3
  %v235 = vld [vmem:[%s233] ss:$16 sm:%s234]
  %s236 = scalar_lea.vmem %s0, 391
  %s237 = smov 12
  %v238 = vld [vmem:[%s236] ss:$16 sm:%s237]
  %vm239 = vcmask 1043458
  %v240 = vsel %vm239, %v238, %v235
  %s241 = scalar_lea.vmem %s0, 391
  %s242 = smov 48
  %v243 = vld [vmem:[%s241] ss:$16 sm:%s242]
  %vm244 = vcmask 1045508
  %v245 = vsel %vm244, %v243, %v240
  %s246 = scalar_lea.vmem %s0, 391
  %s247 = smov 192
  %v248 = vld [vmem:[%s246] ss:$16 sm:%s247]
  %vm249 = vcmask 1047558
  %v250 = vsel %vm249, %v248, %v245
  %251 = vrot.lane.b32.xlu0 %v250, 112
  %v252 = vpop.permute.xlu0 %251
  %vm253 = vcmask 1048448
  %s254 = scalar_lea.vmem %s1, 48
  %255 = vst.msk [vmem:[%s254] sm:$0xff] %vm253, %v252
  %s256 = scalar_lea.vmem %s0, 143
  %s257 = smov 3
  %v258 = vld [vmem:[%s256] ss:$16 sm:%s257]
  %s259 = scalar_lea.vmem %s0, 143
  %s260 = smov 12
  %v261 = vld [vmem:[%s259] ss:$16 sm:%s260]
  %vm262 = vcmask 1043458
  %v263 = vsel %vm262, %v261, %v258
  %s264 = scalar_lea.vmem %s0, 143
  %s265 = smov 48
  %v266 = vld [vmem:[%s264] ss:$16 sm:%s265]
  %vm267 = vcmask 1045508
  %v268 = vsel %vm267, %v266, %v263
  %s269 = scalar_lea.vmem %s0, 143
  %s270 = smov 192
  %v271 = vld [vmem:[%s269] ss:$16 sm:%s270]
  %vm272 = vcmask 1047558
  %v273 = vsel %vm272, %v271, %v268
  %274 = vrot.lane.b32.xlu0 %v273, 112
  %v275 = vpop.permute.xlu0 %274
  %vm276 = vcmask 1048448
  %s277 = scalar_lea.vmem %s1, 24
  %278 = vst.msk [vmem:[%s277] sm:$0xff] %vm276, %v275
  %s279 = scalar_lea.vmem %s0, 399
  %s280 = smov 3
  %v281 = vld [vmem:[%s279] ss:$16 sm:%s280]
  %s282 = scalar_lea.vmem %s0, 399
  %s283 = smov 12
  %v284 = vld [vmem:[%s282] ss:$16 sm:%s283]
  %vm285 = vcmask 1043458
  %v286 = vsel %vm285, %v284, %v281
  %s287 = scalar_lea.vmem %s0, 399
  %s288 = smov 48
  %v289 = vld [vmem:[%s287] ss:$16 sm:%s288]
  %vm290 = vcmask 1045508
  %v291 = vsel %vm290, %v289, %v286
  %s292 = scalar_lea.vmem %s0, 399
  %s293 = smov 192
  %v294 = vld [vmem:[%s292] ss:$16 sm:%s293]
  %vm295 = vcmask 1047558
  %v296 = vsel %vm295, %v294, %v291
  %297 = vrot.lane.b32.xlu0 %v296, 112
  %v298 = vpop.permute.xlu0 %297
  %vm299 = vcmask 1048448
  %s300 = scalar_lea.vmem %s1, 56
  %301 = vst.msk [vmem:[%s300] sm:$0xff] %vm299, %v298
  %s302 = scalar_lea.vmem %s0, 6
  %s303 = smov 3
  %v304 = vld [vmem:[%s302] ss:$16 sm:%s303]
  %s305 = scalar_lea.vmem %s0, 6
  %s306 = smov 12
  %v307 = vld [vmem:[%s305] ss:$16 sm:%s306]
  %vm308 = vcmask 1043458
  %v309 = vsel %vm308, %v307, %v304
  %s310 = scalar_lea.vmem %s0, 6
  %s311 = smov 48
  %v312 = vld [vmem:[%s310] ss:$16 sm:%s311]
  %vm313 = vcmask 1045508
  %v314 = vsel %vm313, %v312, %v309
  %s315 = scalar_lea.vmem %s0, 6
  %s316 = smov 192
  %v317 = vld [vmem:[%s315] ss:$16 sm:%s316]
  %vm318 = vcmask 1047558
  %v319 = vsel %vm318, %v317, %v314
  %320 = vrot.lane.b32.xlu0 %v319, 96
  %v321 = vpop.permute.xlu0 %320
  %vm322 = vcmask 917248
  %323 = vst.msk [vmem:[%s1] sm:$0xff] %vm322, %v321
  %s324 = scalar_lea.vmem %s0, 262
  %s325 = smov 3
  %v326 = vld [vmem:[%s324] ss:$16 sm:%s325]
  %s327 = scalar_lea.vmem %s0, 262
  %s328 = smov 12
  %v329 = vld [vmem:[%s327] ss:$16 sm:%s328]
  %vm330 = vcmask 1043458
  %v331 = vsel %vm330, %v329, %v326
  %s332 = scalar_lea.vmem %s0, 262
  %s333 = smov 48
  %v334 = vld [vmem:[%s332] ss:$16 sm:%s333]
  %vm335 = vcmask 1045508
  %v336 = vsel %vm335, %v334, %v331
  %s337 = scalar_lea.vmem %s0, 262
  %s338 = smov 192
  %v339 = vld [vmem:[%s337] ss:$16 sm:%s338]
  %vm340 = vcmask 1047558
  %v341 = vsel %vm340, %v339, %v336
  %342 = vrot.lane.b32.xlu0 %v341, 96
  %v343 = vpop.permute.xlu0 %342
  %vm344 = vcmask 917248
  %s345 = scalar_lea.vmem %s1, 32
  %346 = vst.msk [vmem:[%s345] sm:$0xff] %vm344, %v343
  %s347 = scalar_lea.vmem %s0, 14
  %s348 = smov 3
  %v349 = vld [vmem:[%s347] ss:$16 sm:%s348]
  %s350 = scalar_lea.vmem %s0, 14
  %s351 = smov 12
  %v352 = vld [vmem:[%s350] ss:$16 sm:%s351]
  %vm353 = vcmask 1043458
  %v354 = vsel %vm353, %v352, %v349
  %s355 = scalar_lea.vmem %s0, 14
  %s356 = smov 48
  %v357 = vld [vmem:[%s355] ss:$16 sm:%s356]
  %vm358 = vcmask 1045508
  %v359 = vsel %vm358, %v357, %v354
  %s360 = scalar_lea.vmem %s0, 14
  %s361 = smov 192
  %v362 = vld [vmem:[%s360] ss:$16 sm:%s361]
  %vm363 = vcmask 1047558
  %v364 = vsel %vm363, %v362, %v359
  %365 = vrot.lane.b32.xlu0 %v364, 96
  %v366 = vpop.permute.xlu0 %365
  %vm367 = vcmask 917248
  %s368 = scalar_lea.vmem %s1, 8
  %369 = vst.msk [vmem:[%s368] sm:$0xff] %vm367, %v366
  %s370 = scalar_lea.vmem %s0, 270
  %s371 = smov 3
  %v372 = vld [vmem:[%s370] ss:$16 sm:%s371]
  %s373 = scalar_lea.vmem %s0, 270
  %s374 = smov 12
  %v375 = vld [vmem:[%s373] ss:$16 sm:%s374]
  %vm376 = vcmask 1043458
  %v377 = vsel %vm376, %v375, %v372
  %s378 = scalar_lea.vmem %s0, 270
  %s379 = smov 48
  %v380 = vld [vmem:[%s378] ss:$16 sm:%s379]
  %vm381 = vcmask 1045508
  %v382 = vsel %vm381, %v380, %v377
  %s383 = scalar_lea.vmem %s0, 270
  %s384 = smov 192
  %v385 = vld [vmem:[%s383] ss:$16 sm:%s384]
  %vm386 = vcmask 1047558
  %v387 = vsel %vm386, %v385, %v382
  %388 = vrot.lane.b32.xlu0 %v387, 96
  %v389 = vpop.permute.xlu0 %388
  %vm390 = vcmask 917248
  %s391 = scalar_lea.vmem %s1, 40
  %392 = vst.msk [vmem:[%s391] sm:$0xff] %vm390, %v389
  %s393 = scalar_lea.vmem %s0, 134
  %s394 = smov 3
  %v395 = vld [vmem:[%s393] ss:$16 sm:%s394]
  %s396 = scalar_lea.vmem %s0, 134
  %s397 = smov 12
  %v398 = vld [vmem:[%s396] ss:$16 sm:%s397]
  %vm399 = vcmask 1043458
  %v400 = vsel %vm399, %v398, %v395
  %s401 = scalar_lea.vmem %s0, 134
  %s402 = smov 48
  %v403 = vld [vmem:[%s401] ss:$16 sm:%s402]
  %vm404 = vcmask 1045508
  %v405 = vsel %vm404, %v403, %v400
  %s406 = scalar_lea.vmem %s0, 134
  %s407 = smov 192
  %v408 = vld [vmem:[%s406] ss:$16 sm:%s407]
  %vm409 = vcmask 1047558
  %v410 = vsel %vm409, %v408, %v405
  %411 = vrot.lane.b32.xlu0 %v410, 96
  %v412 = vpop.permute.xlu0 %411
  %vm413 = vcmask 917248
  %s414 = scalar_lea.vmem %s1, 16
  %415 = vst.msk [vmem:[%s414] sm:$0xff] %vm413, %v412
  %s416 = scalar_lea.vmem %s0, 390
  %s417 = smov 3
  %v418 = vld [vmem:[%s416] ss:$16 sm:%s417]
  %s419 = scalar_lea.vmem %s0, 390
  %s420 = smov 12
  %v421 = vld [vmem:[%s419] ss:$16 sm:%s420]
  %vm422 = vcmask 1043458
  %v423 = vsel %vm422, %v421, %v418
  %s424 = scalar_lea.vmem %s0, 390
  %s425 = smov 48
  %v426 = vld [vmem:[%s424] ss:$16 sm:%s425]
  %vm427 = vcmask 1045508
  %v428 = vsel %vm427, %v426, %v423
  %s429 = scalar_lea.vmem %s0, 390
  %s430 = smov 192
  %v431 = vld [vmem:[%s429] ss:$16 sm:%s430]
  %vm432 = vcmask 1047558
  %v433 = vsel %vm432, %v431, %v428
  %434 = vrot.lane.b32.xlu0 %v433, 96
  %v435 = vpop.permute.xlu0 %434
  %vm436 = vcmask 917248
  %s437 = scalar_lea.vmem %s1, 48
  %438 = vst.msk [vmem:[%s437] sm:$0xff] %vm436, %v435
  %s439 = scalar_lea.vmem %s0, 142
  %s440 = smov 3
  %v441 = vld [vmem:[%s439] ss:$16 sm:%s440]
  %s442 = scalar_lea.vmem %s0, 142
  %s443 = smov 12
  %v444 = vld [vmem:[%s442] ss:$16 sm:%s443]
  %vm445 = vcmask 1043458
  %v446 = vsel %vm445, %v444, %v441
  %s447 = scalar_lea.vmem %s0, 142
  %s448 = smov 48
  %v449 = vld [vmem:[%s447] ss:$16 sm:%s448]
  %vm450 = vcmask 1045508
  %v451 = vsel %vm450, %v449, %v446
  %s452 = scalar_lea.vmem %s0, 142
  %s453 = smov 192
  %v454 = vld [vmem:[%s452] ss:$16 sm:%s453]
  %vm455 = vcmask 1047558
  %v456 = vsel %vm455, %v454, %v451
  %457 = vrot.lane.b32.xlu0 %v456, 96
  %v458 = vpop.permute.xlu0 %457
  %vm459 = vcmask 917248
  %s460 = scalar_lea.vmem %s1, 24
  %461 = vst.msk [vmem:[%s460] sm:$0xff] %vm459, %v458
  %s462 = scalar_lea.vmem %s0, 398
  %s463 = smov 3
  %v464 = vld [vmem:[%s462] ss:$16 sm:%s463]
  %s465 = scalar_lea.vmem %s0, 398
  %s466 = smov 12
  %v467 = vld [vmem:[%s465] ss:$16 sm:%s466]
  %vm468 = vcmask 1043458
  %v469 = vsel %vm468, %v467, %v464
  %s470 = scalar_lea.vmem %s0, 398
  %s471 = smov 48
  %v472 = vld [vmem:[%s470] ss:$16 sm:%s471]
  %vm473 = vcmask 1045508
  %v474 = vsel %vm473, %v472, %v469
  %s475 = scalar_lea.vmem %s0, 398
  %s476 = smov 192
  %v477 = vld [vmem:[%s475] ss:$16 sm:%s476]
  %vm478 = vcmask 1047558
  %v479 = vsel %vm478, %v477, %v474
  %480 = vrot.lane.b32.xlu0 %v479, 96
  %v481 = vpop.permute.xlu0 %480
  %vm482 = vcmask 917248
  %s483 = scalar_lea.vmem %s1, 56
  %484 = vst.msk [vmem:[%s483] sm:$0xff] %vm482, %v481
  %s485 = scalar_lea.vmem %s0, 5
  %s486 = smov 3
  %v487 = vld [vmem:[%s485] ss:$16 sm:%s486]
  %s488 = scalar_lea.vmem %s0, 5
  %s489 = smov 12
  %v490 = vld [vmem:[%s488] ss:$16 sm:%s489]
  %vm491 = vcmask 1043458
  %v492 = vsel %vm491, %v490, %v487
  %s493 = scalar_lea.vmem %s0, 5
  %s494 = smov 48
  %v495 = vld [vmem:[%s493] ss:$16 sm:%s494]
  %vm496 = vcmask 1045508
  %v497 = vsel %vm496, %v495, %v492
  %s498 = scalar_lea.vmem %s0, 5
  %s499 = smov 192
  %v500 = vld [vmem:[%s498] ss:$16 sm:%s499]
  %vm501 = vcmask 1047558
  %v502 = vsel %vm501, %v500, %v497
  %503 = vrot.lane.b32.xlu0 %v502, 80
  %v504 = vpop.permute.xlu0 %503
  %vm505 = vcmask 786048
  %506 = vst.msk [vmem:[%s1] sm:$0xff] %vm505, %v504
  %s507 = scalar_lea.vmem %s0, 261
  %s508 = smov 3
  %v509 = vld [vmem:[%s507] ss:$16 sm:%s508]
  %s510 = scalar_lea.vmem %s0, 261
  %s511 = smov 12
  %v512 = vld [vmem:[%s510] ss:$16 sm:%s511]
  %vm513 = vcmask 1043458
  %v514 = vsel %vm513, %v512, %v509
  %s515 = scalar_lea.vmem %s0, 261
  %s516 = smov 48
  %v517 = vld [vmem:[%s515] ss:$16 sm:%s516]
  %vm518 = vcmask 1045508
  %v519 = vsel %vm518, %v517, %v514
  %s520 = scalar_lea.vmem %s0, 261
  %s521 = smov 192
  %v522 = vld [vmem:[%s520] ss:$16 sm:%s521]
  %vm523 = vcmask 1047558
  %v524 = vsel %vm523, %v522, %v519
  %525 = vrot.lane.b32.xlu0 %v524, 80
  %v526 = vpop.permute.xlu0 %525
  %vm527 = vcmask 786048
  %s528 = scalar_lea.vmem %s1, 32
  %529 = vst.msk [vmem:[%s528] sm:$0xff] %vm527, %v526
  %s530 = scalar_lea.vmem %s0, 13
  %s531 = smov 3
  %v532 = vld [vmem:[%s530] ss:$16 sm:%s531]
  %s533 = scalar_lea.vmem %s0, 13
  %s534 = smov 12
  %v535 = vld [vmem:[%s533] ss:$16 sm:%s534]
  %vm536 = vcmask 1043458
  %v537 = vsel %vm536, %v535, %v532
  %s538 = scalar_lea.vmem %s0, 13
  %s539 = smov 48
  %v540 = vld [vmem:[%s538] ss:$16 sm:%s539]
  %vm541 = vcmask 1045508
  %v542 = vsel %vm541, %v540, %v537
  %s543 = scalar_lea.vmem %s0, 13
  %s544 = smov 192
  %v545 = vld [vmem:[%s543] ss:$16 sm:%s544]
  %vm546 = vcmask 1047558
  %v547 = vsel %vm546, %v545, %v542
  %548 = vrot.lane.b32.xlu0 %v547, 80
  %v549 = vpop.permute.xlu0 %548
  %vm550 = vcmask 786048
  %s551 = scalar_lea.vmem %s1, 8
  %552 = vst.msk [vmem:[%s551] sm:$0xff] %vm550, %v549
  %s553 = scalar_lea.vmem %s0, 269
  %s554 = smov 3
  %v555 = vld [vmem:[%s553] ss:$16 sm:%s554]
  %s556 = scalar_lea.vmem %s0, 269
  %s557 = smov 12
  %v558 = vld [vmem:[%s556] ss:$16 sm:%s557]
  %vm559 = vcmask 1043458
  %v560 = vsel %vm559, %v558, %v555
  %s561 = scalar_lea.vmem %s0, 269
  %s562 = smov 48
  %v563 = vld [vmem:[%s561] ss:$16 sm:%s562]
  %vm564 = vcmask 1045508
  %v565 = vsel %vm564, %v563, %v560
  %s566 = scalar_lea.vmem %s0, 269
  %s567 = smov 192
  %v568 = vld [vmem:[%s566] ss:$16 sm:%s567]
  %vm569 = vcmask 1047558
  %v570 = vsel %vm569, %v568, %v565
  %571 = vrot.lane.b32.xlu0 %v570, 80
  %v572 = vpop.permute.xlu0 %571
  %vm573 = vcmask 786048
  %s574 = scalar_lea.vmem %s1, 40
  %575 = vst.msk [vmem:[%s574] sm:$0xff] %vm573, %v572
  %s576 = scalar_lea.vmem %s0, 133
  %s577 = smov 3
  %v578 = vld [vmem:[%s576] ss:$16 sm:%s577]
  %s579 = scalar_lea.vmem %s0, 133
  %s580 = smov 12
  %v581 = vld [vmem:[%s579] ss:$16 sm:%s580]
  %vm582 = vcmask 1043458
  %v583 = vsel %vm582, %v581, %v578
  %s584 = scalar_lea.vmem %s0, 133
  %s585 = smov 48
  %v586 = vld [vmem:[%s584] ss:$16 sm:%s585]
  %vm587 = vcmask 1045508
  %v588 = vsel %vm587, %v586, %v583
  %s589 = scalar_lea.vmem %s0, 133
  %s590 = smov 192
  %v591 = vld [vmem:[%s589] ss:$16 sm:%s590]
  %vm592 = vcmask 1047558
  %v593 = vsel %vm592, %v591, %v588
  %594 = vrot.lane.b32.xlu0 %v593, 80
  %v595 = vpop.permute.xlu0 %594
  %vm596 = vcmask 786048
  %s597 = scalar_lea.vmem %s1, 16
  %598 = vst.msk [vmem:[%s597] sm:$0xff] %vm596, %v595
  %s599 = scalar_lea.vmem %s0, 389
  %s600 = smov 3
  %v601 = vld [vmem:[%s599] ss:$16 sm:%s600]
  %s602 = scalar_lea.vmem %s0, 389
  %s603 = smov 12
  %v604 = vld [vmem:[%s602] ss:$16 sm:%s603]
  %vm605 = vcmask 1043458
  %v606 = vsel %vm605, %v604, %v601
  %s607 = scalar_lea.vmem %s0, 389
  %s608 = smov 48
  %v609 = vld [vmem:[%s607] ss:$16 sm:%s608]
  %vm610 = vcmask 1045508
  %v611 = vsel %vm610, %v609, %v606
  %s612 = scalar_lea.vmem %s0, 389
  %s613 = smov 192
  %v614 = vld [vmem:[%s612] ss:$16 sm:%s613]
  %vm615 = vcmask 1047558
  %v616 = vsel %vm615, %v614, %v611
  %617 = vrot.lane.b32.xlu0 %v616, 80
  %v618 = vpop.permute.xlu0 %617
  %vm619 = vcmask 786048
  %s620 = scalar_lea.vmem %s1, 48
  %621 = vst.msk [vmem:[%s620] sm:$0xff] %vm619, %v618
  %s622 = scalar_lea.vmem %s0, 141
  %s623 = smov 3
  %v624 = vld [vmem:[%s622] ss:$16 sm:%s623]
  %s625 = scalar_lea.vmem %s0, 141
  %s626 = smov 12
  %v627 = vld [vmem:[%s625] ss:$16 sm:%s626]
  %vm628 = vcmask 1043458
  %v629 = vsel %vm628, %v627, %v624
  %s630 = scalar_lea.vmem %s0, 141
  %s631 = smov 48
  %v632 = vld [vmem:[%s630] ss:$16 sm:%s631]
  %vm633 = vcmask 1045508
  %v634 = vsel %vm633, %v632, %v629
  %s635 = scalar_lea.vmem %s0, 141
  %s636 = smov 192
  %v637 = vld [vmem:[%s635] ss:$16 sm:%s636]
  %vm638 = vcmask 1047558
  %v639 = vsel %vm638, %v637, %v634
  %640 = vrot.lane.b32.xlu0 %v639, 80
  %v641 = vpop.permute.xlu0 %640
  %vm642 = vcmask 786048
  %s643 = scalar_lea.vmem %s1, 24
  %644 = vst.msk [vmem:[%s643] sm:$0xff] %vm642, %v641
  %s645 = scalar_lea.vmem %s0, 397
  %s646 = smov 3
  %v647 = vld [vmem:[%s645] ss:$16 sm:%s646]
  %s648 = scalar_lea.vmem %s0, 397
  %s649 = smov 12
  %v650 = vld [vmem:[%s648] ss:$16 sm:%s649]
  %vm651 = vcmask 1043458
  %v652 = vsel %vm651, %v650, %v647
  %s653 = scalar_lea.vmem %s0, 397
  %s654 = smov 48
  %v655 = vld [vmem:[%s653] ss:$16 sm:%s654]
  %vm656 = vcmask 1045508
  %v657 = vsel %vm656, %v655, %v652
  %s658 = scalar_lea.vmem %s0, 397
  %s659 = smov 192
  %v660 = vld [vmem:[%s658] ss:$16 sm:%s659]
  %vm661 = vcmask 1047558
  %v662 = vsel %vm661, %v660, %v657
  %663 = vrot.lane.b32.xlu0 %v662, 80
  %v664 = vpop.permute.xlu0 %663
  %vm665 = vcmask 786048
  %s666 = scalar_lea.vmem %s1, 56
  %667 = vst.msk [vmem:[%s666] sm:$0xff] %vm665, %v664
  %s668 = scalar_lea.vmem %s0, 4
  %s669 = smov 3
  %v670 = vld [vmem:[%s668] ss:$16 sm:%s669]
  %s671 = scalar_lea.vmem %s0, 4
  %s672 = smov 12
  %v673 = vld [vmem:[%s671] ss:$16 sm:%s672]
  %vm674 = vcmask 1043458
  %v675 = vsel %vm674, %v673, %v670
  %s676 = scalar_lea.vmem %s0, 4
  %s677 = smov 48
  %v678 = vld [vmem:[%s676] ss:$16 sm:%s677]
  %vm679 = vcmask 1045508
  %v680 = vsel %vm679, %v678, %v675
  %s681 = scalar_lea.vmem %s0, 4
  %s682 = smov 192
  %v683 = vld [vmem:[%s681] ss:$16 sm:%s682]
  %vm684 = vcmask 1047558
  %v685 = vsel %vm684, %v683, %v680
  %686 = vrot.lane.b32.xlu0 %v685, 64
  %v687 = vpop.permute.xlu0 %686
  %vm688 = vcmask 654848
  %689 = vst.msk [vmem:[%s1] sm:$0xff] %vm688, %v687
  %s690 = scalar_lea.vmem %s0, 260
  %s691 = smov 3
  %v692 = vld [vmem:[%s690] ss:$16 sm:%s691]
  %s693 = scalar_lea.vmem %s0, 260
  %s694 = smov 12
  %v695 = vld [vmem:[%s693] ss:$16 sm:%s694]
  %vm696 = vcmask 1043458
  %v697 = vsel %vm696, %v695, %v692
  %s698 = scalar_lea.vmem %s0, 260
  %s699 = smov 48
  %v700 = vld [vmem:[%s698] ss:$16 sm:%s699]
  %vm701 = vcmask 1045508
  %v702 = vsel %vm701, %v700, %v697
  %s703 = scalar_lea.vmem %s0, 260
  %s704 = smov 192
  %v705 = vld [vmem:[%s703] ss:$16 sm:%s704]
  %vm706 = vcmask 1047558
  %v707 = vsel %vm706, %v705, %v702
  %708 = vrot.lane.b32.xlu0 %v707, 64
  %v709 = vpop.permute.xlu0 %708
  %vm710 = vcmask 654848
  %s711 = scalar_lea.vmem %s1, 32
  %712 = vst.msk [vmem:[%s711] sm:$0xff] %vm710, %v709
  %s713 = scalar_lea.vmem %s0, 12
  %s714 = smov 3
  %v715 = vld [vmem:[%s713] ss:$16 sm:%s714]
  %s716 = scalar_lea.vmem %s0, 12
  %s717 = smov 12
  %v718 = vld [vmem:[%s716] ss:$16 sm:%s717]
  %vm719 = vcmask 1043458
  %v720 = vsel %vm719, %v718, %v715
  %s721 = scalar_lea.vmem %s0, 12
  %s722 = smov 48
  %v723 = vld [vmem:[%s721] ss:$16 sm:%s722]
  %vm724 = vcmask 1045508
  %v725 = vsel %vm724, %v723, %v720
  %s726 = scalar_lea.vmem %s0, 12
  %s727 = smov 192
  %v728 = vld [vmem:[%s726] ss:$16 sm:%s727]
  %vm729 = vcmask 1047558
  %v730 = vsel %vm729, %v728, %v725
  %731 = vrot.lane.b32.xlu0 %v730, 64
  %v732 = vpop.permute.xlu0 %731
  %vm733 = vcmask 654848
  %s734 = scalar_lea.vmem %s1, 8
  %735 = vst.msk [vmem:[%s734] sm:$0xff] %vm733, %v732
  %s736 = scalar_lea.vmem %s0, 268
  %s737 = smov 3
  %v738 = vld [vmem:[%s736] ss:$16 sm:%s737]
  %s739 = scalar_lea.vmem %s0, 268
  %s740 = smov 12
  %v741 = vld [vmem:[%s739] ss:$16 sm:%s740]
  %vm742 = vcmask 1043458
  %v743 = vsel %vm742, %v741, %v738
  %s744 = scalar_lea.vmem %s0, 268
  %s745 = smov 48
  %v746 = vld [vmem:[%s744] ss:$16 sm:%s745]
  %vm747 = vcmask 1045508
  %v748 = vsel %vm747, %v746, %v743
  %s749 = scalar_lea.vmem %s0, 268
  %s750 = smov 192
  %v751 = vld [vmem:[%s749] ss:$16 sm:%s750]
  %vm752 = vcmask 1047558
  %v753 = vsel %vm752, %v751, %v748
  %754 = vrot.lane.b32.xlu0 %v753, 64
  %v755 = vpop.permute.xlu0 %754
  %vm756 = vcmask 654848
  %s757 = scalar_lea.vmem %s1, 40
  %758 = vst.msk [vmem:[%s757] sm:$0xff] %vm756, %v755
  %s759 = scalar_lea.vmem %s0, 132
  %s760 = smov 3
  %v761 = vld [vmem:[%s759] ss:$16 sm:%s760]
  %s762 = scalar_lea.vmem %s0, 132
  %s763 = smov 12
  %v764 = vld [vmem:[%s762] ss:$16 sm:%s763]
  %vm765 = vcmask 1043458
  %v766 = vsel %vm765, %v764, %v761
  %s767 = scalar_lea.vmem %s0, 132
  %s768 = smov 48
  %v769 = vld [vmem:[%s767] ss:$16 sm:%s768]
  %vm770 = vcmask 1045508
  %v771 = vsel %vm770, %v769, %v766
  %s772 = scalar_lea.vmem %s0, 132
  %s773 = smov 192
  %v774 = vld [vmem:[%s772] ss:$16 sm:%s773]
  %vm775 = vcmask 1047558
  %v776 = vsel %vm775, %v774, %v771
  %777 = vrot.lane.b32.xlu0 %v776, 64
  %v778 = vpop.permute.xlu0 %777
  %vm779 = vcmask 654848
  %s780 = scalar_lea.vmem %s1, 16
  %781 = vst.msk [vmem:[%s780] sm:$0xff] %vm779, %v778
  %s782 = scalar_lea.vmem %s0, 388
  %s783 = smov 3
  %v784 = vld [vmem:[%s782] ss:$16 sm:%s783]
  %s785 = scalar_lea.vmem %s0, 388
  %s786 = smov 12
  %v787 = vld [vmem:[%s785] ss:$16 sm:%s786]
  %vm788 = vcmask 1043458
  %v789 = vsel %vm788, %v787, %v784
  %s790 = scalar_lea.vmem %s0, 388
  %s791 = smov 48
  %v792 = vld [vmem:[%s790] ss:$16 sm:%s791]
  %vm793 = vcmask 1045508
  %v794 = vsel %vm793, %v792, %v789
  %s795 = scalar_lea.vmem %s0, 388
  %s796 = smov 192
  %v797 = vld [vmem:[%s795] ss:$16 sm:%s796]
  %vm798 = vcmask 1047558
  %v799 = vsel %vm798, %v797, %v794
  %800 = vrot.lane.b32.xlu0 %v799, 64
  %v801 = vpop.permute.xlu0 %800
  %vm802 = vcmask 654848
  %s803 = scalar_lea.vmem %s1, 48
  %804 = vst.msk [vmem:[%s803] sm:$0xff] %vm802, %v801
  %s805 = scalar_lea.vmem %s0, 140
  %s806 = smov 3
  %v807 = vld [vmem:[%s805] ss:$16 sm:%s806]
  %s808 = scalar_lea.vmem %s0, 140
  %s809 = smov 12
  %v810 = vld [vmem:[%s808] ss:$16 sm:%s809]
  %vm811 = vcmask 1043458
  %v812 = vsel %vm811, %v810, %v807
  %s813 = scalar_lea.vmem %s0, 140
  %s814 = smov 48
  %v815 = vld [vmem:[%s813] ss:$16 sm:%s814]
  %vm816 = vcmask 1045508
  %v817 = vsel %vm816, %v815, %v812
  %s818 = scalar_lea.vmem %s0, 140
  %s819 = smov 192
  %v820 = vld [vmem:[%s818] ss:$16 sm:%s819]
  %vm821 = vcmask 1047558
  %v822 = vsel %vm821, %v820, %v817
  %823 = vrot.lane.b32.xlu0 %v822, 64
  %v824 = vpop.permute.xlu0 %823
  %vm825 = vcmask 654848
  %s826 = scalar_lea.vmem %s1, 24
  %827 = vst.msk [vmem:[%s826] sm:$0xff] %vm825, %v824
  %s828 = scalar_lea.vmem %s0, 396
  %s829 = smov 3
  %v830 = vld [vmem:[%s828] ss:$16 sm:%s829]
  %s831 = scalar_lea.vmem %s0, 396
  %s832 = smov 12
  %v833 = vld [vmem:[%s831] ss:$16 sm:%s832]
  %vm834 = vcmask 1043458
  %v835 = vsel %vm834, %v833, %v830
  %s836 = scalar_lea.vmem %s0, 396
  %s837 = smov 48
  %v838 = vld [vmem:[%s836] ss:$16 sm:%s837]
  %vm839 = vcmask 1045508
  %v840 = vsel %vm839, %v838, %v835
  %s841 = scalar_lea.vmem %s0, 396
  %s842 = smov 192
  %v843 = vld [vmem:[%s841] ss:$16 sm:%s842]
  %vm844 = vcmask 1047558
  %v845 = vsel %vm844, %v843, %v840
  %846 = vrot.lane.b32.xlu0 %v845, 64
  %v847 = vpop.permute.xlu0 %846
  %vm848 = vcmask 654848
  %s849 = scalar_lea.vmem %s1, 56
  %850 = vst.msk [vmem:[%s849] sm:$0xff] %vm848, %v847
  %s851 = scalar_lea.vmem %s0, 3
  %s852 = smov 3
  %v853 = vld [vmem:[%s851] ss:$16 sm:%s852]
  %s854 = scalar_lea.vmem %s0, 3
  %s855 = smov 12
  %v856 = vld [vmem:[%s854] ss:$16 sm:%s855]
  %vm857 = vcmask 1043458
  %v858 = vsel %vm857, %v856, %v853
  %s859 = scalar_lea.vmem %s0, 3
  %s860 = smov 48
  %v861 = vld [vmem:[%s859] ss:$16 sm:%s860]
  %vm862 = vcmask 1045508
  %v863 = vsel %vm862, %v861, %v858
  %s864 = scalar_lea.vmem %s0, 3
  %s865 = smov 192
  %v866 = vld [vmem:[%s864] ss:$16 sm:%s865]
  %vm867 = vcmask 1047558
  %v868 = vsel %vm867, %v866, %v863
  %869 = vrot.lane.b32.xlu0 %v868, 48
  %v870 = vpop.permute.xlu0 %869
  %vm871 = vcmask 523648
  %872 = vst.msk [vmem:[%s1] sm:$0xff] %vm871, %v870
  %s873 = scalar_lea.vmem %s0, 259
  %s874 = smov 3
  %v875 = vld [vmem:[%s873] ss:$16 sm:%s874]
  %s876 = scalar_lea.vmem %s0, 259
  %s877 = smov 12
  %v878 = vld [vmem:[%s876] ss:$16 sm:%s877]
  %vm879 = vcmask 1043458
  %v880 = vsel %vm879, %v878, %v875
  %s881 = scalar_lea.vmem %s0, 259
  %s882 = smov 48
  %v883 = vld [vmem:[%s881] ss:$16 sm:%s882]
  %vm884 = vcmask 1045508
  %v885 = vsel %vm884, %v883, %v880
  %s886 = scalar_lea.vmem %s0, 259
  %s887 = smov 192
  %v888 = vld [vmem:[%s886] ss:$16 sm:%s887]
  %vm889 = vcmask 1047558
  %v890 = vsel %vm889, %v888, %v885
  %891 = vrot.lane.b32.xlu0 %v890, 48
  %v892 = vpop.permute.xlu0 %891
  %vm893 = vcmask 523648
  %s894 = scalar_lea.vmem %s1, 32
  %895 = vst.msk [vmem:[%s894] sm:$0xff] %vm893, %v892
  %s896 = scalar_lea.vmem %s0, 11
  %s897 = smov 3
  %v898 = vld [vmem:[%s896] ss:$16 sm:%s897]
  %s899 = scalar_lea.vmem %s0, 11
  %s900 = smov 12
  %v901 = vld [vmem:[%s899] ss:$16 sm:%s900]
  %vm902 = vcmask 1043458
  %v903 = vsel %vm902, %v901, %v898
  %s904 = scalar_lea.vmem %s0, 11
  %s905 = smov 48
  %v906 = vld [vmem:[%s904] ss:$16 sm:%s905]
  %vm907 = vcmask 1045508
  %v908 = vsel %vm907, %v906, %v903
  %s909 = scalar_lea.vmem %s0, 11
  %s910 = smov 192
  %v911 = vld [vmem:[%s909] ss:$16 sm:%s910]
  %vm912 = vcmask 1047558
  %v913 = vsel %vm912, %v911, %v908
  %914 = vrot.lane.b32.xlu0 %v913, 48
  %v915 = vpop.permute.xlu0 %914
  %vm916 = vcmask 523648
  %s917 = scalar_lea.vmem %s1, 8
  %918 = vst.msk [vmem:[%s917] sm:$0xff] %vm916, %v915
  %s919 = scalar_lea.vmem %s0, 267
  %s920 = smov 3
  %v921 = vld [vmem:[%s919] ss:$16 sm:%s920]
  %s922 = scalar_lea.vmem %s0, 267
  %s923 = smov 12
  %v924 = vld [vmem:[%s922] ss:$16 sm:%s923]
  %vm925 = vcmask 1043458
  %v926 = vsel %vm925, %v924, %v921
  %s927 = scalar_lea.vmem %s0, 267
  %s928 = smov 48
  %v929 = vld [vmem:[%s927] ss:$16 sm:%s928]
  %vm930 = vcmask 1045508
  %v931 = vsel %vm930, %v929, %v926
  %s932 = scalar_lea.vmem %s0, 267
  %s933 = smov 192
  %v934 = vld [vmem:[%s932] ss:$16 sm:%s933]
  %vm935 = vcmask 1047558
  %v936 = vsel %vm935, %v934, %v931
  %937 = vrot.lane.b32.xlu0 %v936, 48
  %v938 = vpop.permute.xlu0 %937
  %vm939 = vcmask 523648
  %s940 = scalar_lea.vmem %s1, 40
  %941 = vst.msk [vmem:[%s940] sm:$0xff] %vm939, %v938
  %s942 = scalar_lea.vmem %s0, 131
  %s943 = smov 3
  %v944 = vld [vmem:[%s942] ss:$16 sm:%s943]
  %s945 = scalar_lea.vmem %s0, 131
  %s946 = smov 12
  %v947 = vld [vmem:[%s945] ss:$16 sm:%s946]
  %vm948 = vcmask 1043458
  %v949 = vsel %vm948, %v947, %v944
  %s950 = scalar_lea.vmem %s0, 131
  %s951 = smov 48
  %v952 = vld [vmem:[%s950] ss:$16 sm:%s951]
  %vm953 = vcmask 1045508
  %v954 = vsel %vm953, %v952, %v949
  %s955 = scalar_lea.vmem %s0, 131
  %s956 = smov 192
  %v957 = vld [vmem:[%s955] ss:$16 sm:%s956]
  %vm958 = vcmask 1047558
  %v959 = vsel %vm958, %v957, %v954
  %960 = vrot.lane.b32.xlu0 %v959, 48
  %v961 = vpop.permute.xlu0 %960
  %vm962 = vcmask 523648
  %s963 = scalar_lea.vmem %s1, 16
  %964 = vst.msk [vmem:[%s963] sm:$0xff] %vm962, %v961
  %s965 = scalar_lea.vmem %s0, 387
  %s966 = smov 3
  %v967 = vld [vmem:[%s965] ss:$16 sm:%s966]
  %s968 = scalar_lea.vmem %s0, 387
  %s969 = smov 12
  %v970 = vld [vmem:[%s968] ss:$16 sm:%s969]
  %vm971 = vcmask 1043458
  %v972 = vsel %vm971, %v970, %v967
  %s973 = scalar_lea.vmem %s0, 387
  %s974 = smov 48
  %v975 = vld [vmem:[%s973] ss:$16 sm:%s974]
  %vm976 = vcmask 1045508
  %v977 = vsel %vm976, %v975, %v972
  %s978 = scalar_lea.vmem %s0, 387
  %s979 = smov 192
  %v980 = vld [vmem:[%s978] ss:$16 sm:%s979]
  %vm981 = vcmask 1047558
  %v982 = vsel %vm981, %v980, %v977
  %983 = vrot.lane.b32.xlu0 %v982, 48
  %v984 = vpop.permute.xlu0 %983
  %vm985 = vcmask 523648
  %s986 = scalar_lea.vmem %s1, 48
  %987 = vst.msk [vmem:[%s986] sm:$0xff] %vm985, %v984
  %s988 = scalar_lea.vmem %s0, 139
  %s989 = smov 3
  %v990 = vld [vmem:[%s988] ss:$16 sm:%s989]
  %s991 = scalar_lea.vmem %s0, 139
  %s992 = smov 12
  %v993 = vld [vmem:[%s991] ss:$16 sm:%s992]
  %vm994 = vcmask 1043458
  %v995 = vsel %vm994, %v993, %v990
  %s996 = scalar_lea.vmem %s0, 139
  %s997 = smov 48
  %v998 = vld [vmem:[%s996] ss:$16 sm:%s997]
  %vm999 = vcmask 1045508
  %v1000 = vsel %vm999, %v998, %v995
  %s1001 = scalar_lea.vmem %s0, 139
  %s1002 = smov 192
  %v1003 = vld [vmem:[%s1001] ss:$16 sm:%s1002]
  %vm1004 = vcmask 1047558
  %v1005 = vsel %vm1004, %v1003, %v1000
  %1006 = vrot.lane.b32.xlu0 %v1005, 48
  %v1007 = vpop.permute.xlu0 %1006
  %vm1008 = vcmask 523648
  %s1009 = scalar_lea.vmem %s1, 24
  %1010 = vst.msk [vmem:[%s1009] sm:$0xff] %vm1008, %v1007
  %s1011 = scalar_lea.vmem %s0, 395
  %s1012 = smov 3
  %v1013 = vld [vmem:[%s1011] ss:$16 sm:%s1012]
  %s1014 = scalar_lea.vmem %s0, 395
  %s1015 = smov 12
  %v1016 = vld [vmem:[%s1014] ss:$16 sm:%s1015]
  %vm1017 = vcmask 1043458
  %v1018 = vsel %vm1017, %v1016, %v1013
  %s1019 = scalar_lea.vmem %s0, 395
  %s1020 = smov 48
  %v1021 = vld [vmem:[%s1019] ss:$16 sm:%s1020]
  %vm1022 = vcmask 1045508
  %v1023 = vsel %vm1022, %v1021, %v1018
  %s1024 = scalar_lea.vmem %s0, 395
  %s1025 = smov 192
  %v1026 = vld [vmem:[%s1024] ss:$16 sm:%s1025]
  %vm1027 = vcmask 1047558
  %v1028 = vsel %vm1027, %v1026, %v1023
  %1029 = vrot.lane.b32.xlu0 %v1028, 48
  %v1030 = vpop.permute.xlu0 %1029
  %vm1031 = vcmask 523648
  %s1032 = scalar_lea.vmem %s1, 56
  %1033 = vst.msk [vmem:[%s1032] sm:$0xff] %vm1031, %v1030
  %s1034 = scalar_lea.vmem %s0, 2
  %s1035 = smov 3
  %v1036 = vld [vmem:[%s1034] ss:$16 sm:%s1035]
  %s1037 = scalar_lea.vmem %s0, 2
  %s1038 = smov 12
  %v1039 = vld [vmem:[%s1037] ss:$16 sm:%s1038]
  %vm1040 = vcmask 1043458
  %v1041 = vsel %vm1040, %v1039, %v1036
  %s1042 = scalar_lea.vmem %s0, 2
  %s1043 = smov 48
  %v1044 = vld [vmem:[%s1042] ss:$16 sm:%s1043]
  %vm1045 = vcmask 1045508
  %v1046 = vsel %vm1045, %v1044, %v1041
  %s1047 = scalar_lea.vmem %s0, 2
  %s1048 = smov 192
  %v1049 = vld [vmem:[%s1047] ss:$16 sm:%s1048]
  %vm1050 = vcmask 1047558
  %v1051 = vsel %vm1050, %v1049, %v1046
  %1052 = vrot.lane.b32.xlu0 %v1051, 32
  %v1053 = vpop.permute.xlu0 %1052
  %vm1054 = vcmask 392448
  %1055 = vst.msk [vmem:[%s1] sm:$0xff] %vm1054, %v1053
  %s1056 = scalar_lea.vmem %s0, 258
  %s1057 = smov 3
  %v1058 = vld [vmem:[%s1056] ss:$16 sm:%s1057]
  %s1059 = scalar_lea.vmem %s0, 258
  %s1060 = smov 12
  %v1061 = vld [vmem:[%s1059] ss:$16 sm:%s1060]
  %vm1062 = vcmask 1043458
  %v1063 = vsel %vm1062, %v1061, %v1058
  %s1064 = scalar_lea.vmem %s0, 258
  %s1065 = smov 48
  %v1066 = vld [vmem:[%s1064] ss:$16 sm:%s1065]
  %vm1067 = vcmask 1045508
  %v1068 = vsel %vm1067, %v1066, %v1063
  %s1069 = scalar_lea.vmem %s0, 258
  %s1070 = smov 192
  %v1071 = vld [vmem:[%s1069] ss:$16 sm:%s1070]
  %vm1072 = vcmask 1047558
  %v1073 = vsel %vm1072, %v1071, %v1068
  %1074 = vrot.lane.b32.xlu0 %v1073, 32
  %v1075 = vpop.permute.xlu0 %1074
  %vm1076 = vcmask 392448
  %s1077 = scalar_lea.vmem %s1, 32
  %1078 = vst.msk [vmem:[%s1077] sm:$0xff] %vm1076, %v1075
  %s1079 = scalar_lea.vmem %s0, 10
  %s1080 = smov 3
  %v1081 = vld [vmem:[%s1079] ss:$16 sm:%s1080]
  %s1082 = scalar_lea.vmem %s0, 10
  %s1083 = smov 12
  %v1084 = vld [vmem:[%s1082] ss:$16 sm:%s1083]
  %vm1085 = vcmask 1043458
  %v1086 = vsel %vm1085, %v1084, %v1081
  %s1087 = scalar_lea.vmem %s0, 10
  %s1088 = smov 48
  %v1089 = vld [vmem:[%s1087] ss:$16 sm:%s1088]
  %vm1090 = vcmask 1045508
  %v1091 = vsel %vm1090, %v1089, %v1086
  %s1092 = scalar_lea.vmem %s0, 10
  %s1093 = smov 192
  %v1094 = vld [vmem:[%s1092] ss:$16 sm:%s1093]
  %vm1095 = vcmask 1047558
  %v1096 = vsel %vm1095, %v1094, %v1091
  %1097 = vrot.lane.b32.xlu0 %v1096, 32
  %v1098 = vpop.permute.xlu0 %1097
  %vm1099 = vcmask 392448
  %s1100 = scalar_lea.vmem %s1, 8
  %1101 = vst.msk [vmem:[%s1100] sm:$0xff] %vm1099, %v1098
  %s1102 = scalar_lea.vmem %s0, 266
  %s1103 = smov 3
  %v1104 = vld [vmem:[%s1102] ss:$16 sm:%s1103]
  %s1105 = scalar_lea.vmem %s0, 266
  %s1106 = smov 12
  %v1107 = vld [vmem:[%s1105] ss:$16 sm:%s1106]
  %vm1108 = vcmask 1043458
  %v1109 = vsel %vm1108, %v1107, %v1104
  %s1110 = scalar_lea.vmem %s0, 266
  %s1111 = smov 48
  %v1112 = vld [vmem:[%s1110] ss:$16 sm:%s1111]
  %vm1113 = vcmask 1045508
  %v1114 = vsel %vm1113, %v1112, %v1109
  %s1115 = scalar_lea.vmem %s0, 266
  %s1116 = smov 192
  %v1117 = vld [vmem:[%s1115] ss:$16 sm:%s1116]
  %vm1118 = vcmask 1047558
  %v1119 = vsel %vm1118, %v1117, %v1114
  %1120 = vrot.lane.b32.xlu0 %v1119, 32
  %v1121 = vpop.permute.xlu0 %1120
  %vm1122 = vcmask 392448
  %s1123 = scalar_lea.vmem %s1, 40
  %1124 = vst.msk [vmem:[%s1123] sm:$0xff] %vm1122, %v1121
  %s1125 = scalar_lea.vmem %s0, 130
  %s1126 = smov 3
  %v1127 = vld [vmem:[%s1125] ss:$16 sm:%s1126]
  %s1128 = scalar_lea.vmem %s0, 130
  %s1129 = smov 12
  %v1130 = vld [vmem:[%s1128] ss:$16 sm:%s1129]
  %vm1131 = vcmask 1043458
  %v1132 = vsel %vm1131, %v1130, %v1127
  %s1133 = scalar_lea.vmem %s0, 130
  %s1134 = smov 48
  %v1135 = vld [vmem:[%s1133] ss:$16 sm:%s1134]
  %vm1136 = vcmask 1045508
  %v1137 = vsel %vm1136, %v1135, %v1132
  %s1138 = scalar_lea.vmem %s0, 130
  %s1139 = smov 192
  %v1140 = vld [vmem:[%s1138] ss:$16 sm:%s1139]
  %vm1141 = vcmask 1047558
  %v1142 = vsel %vm1141, %v1140, %v1137
  %1143 = vrot.lane.b32.xlu0 %v1142, 32
  %v1144 = vpop.permute.xlu0 %1143
  %vm1145 = vcmask 392448
  %s1146 = scalar_lea.vmem %s1, 16
  %1147 = vst.msk [vmem:[%s1146] sm:$0xff] %vm1145, %v1144
  %s1148 = scalar_lea.vmem %s0, 386
  %s1149 = smov 3
  %v1150 = vld [vmem:[%s1148] ss:$16 sm:%s1149]
  %s1151 = scalar_lea.vmem %s0, 386
  %s1152 = smov 12
  %v1153 = vld [vmem:[%s1151] ss:$16 sm:%s1152]
  %vm1154 = vcmask 1043458
  %v1155 = vsel %vm1154, %v1153, %v1150
  %s1156 = scalar_lea.vmem %s0, 386
  %s1157 = smov 48
  %v1158 = vld [vmem:[%s1156] ss:$16 sm:%s1157]
  %vm1159 = vcmask 1045508
  %v1160 = vsel %vm1159, %v1158, %v1155
  %s1161 = scalar_lea.vmem %s0, 386
  %s1162 = smov 192
  %v1163 = vld [vmem:[%s1161] ss:$16 sm:%s1162]
  %vm1164 = vcmask 1047558
  %v1165 = vsel %vm1164, %v1163, %v1160
  %1166 = vrot.lane.b32.xlu0 %v1165, 32
  %v1167 = vpop.permute.xlu0 %1166
  %vm1168 = vcmask 392448
  %s1169 = scalar_lea.vmem %s1, 48
  %1170 = vst.msk [vmem:[%s1169] sm:$0xff] %vm1168, %v1167
  %s1171 = scalar_lea.vmem %s0, 138
  %s1172 = smov 3
  %v1173 = vld [vmem:[%s1171] ss:$16 sm:%s1172]
  %s1174 = scalar_lea.vmem %s0, 138
  %s1175 = smov 12
  %v1176 = vld [vmem:[%s1174] ss:$16 sm:%s1175]
  %vm1177 = vcmask 1043458
  %v1178 = vsel %vm1177, %v1176, %v1173
  %s1179 = scalar_lea.vmem %s0, 138
  %s1180 = smov 48
  %v1181 = vld [vmem:[%s1179] ss:$16 sm:%s1180]
  %vm1182 = vcmask 1045508
  %v1183 = vsel %vm1182, %v1181, %v1178
  %s1184 = scalar_lea.vmem %s0, 138
  %s1185 = smov 192
  %v1186 = vld [vmem:[%s1184] ss:$16 sm:%s1185]
  %vm1187 = vcmask 1047558
  %v1188 = vsel %vm1187, %v1186, %v1183
  %1189 = vrot.lane.b32.xlu0 %v1188, 32
  %v1190 = vpop.permute.xlu0 %1189
  %vm1191 = vcmask 392448
  %s1192 = scalar_lea.vmem %s1, 24
  %1193 = vst.msk [vmem:[%s1192] sm:$0xff] %vm1191, %v1190
  %s1194 = scalar_lea.vmem %s0, 394
  %s1195 = smov 3
  %v1196 = vld [vmem:[%s1194] ss:$16 sm:%s1195]
  %s1197 = scalar_lea.vmem %s0, 394
  %s1198 = smov 12
  %v1199 = vld [vmem:[%s1197] ss:$16 sm:%s1198]
  %vm1200 = vcmask 1043458
  %v1201 = vsel %vm1200, %v1199, %v1196
  %s1202 = scalar_lea.vmem %s0, 394
  %s1203 = smov 48
  %v1204 = vld [vmem:[%s1202] ss:$16 sm:%s1203]
  %vm1205 = vcmask 1045508
  %v1206 = vsel %vm1205, %v1204, %v1201
  %s1207 = scalar_lea.vmem %s0, 394
  %s1208 = smov 192
  %v1209 = vld [vmem:[%s1207] ss:$16 sm:%s1208]
  %vm1210 = vcmask 1047558
  %v1211 = vsel %vm1210, %v1209, %v1206
  %1212 = vrot.lane.b32.xlu0 %v1211, 32
  %v1213 = vpop.permute.xlu0 %1212
  %vm1214 = vcmask 392448
  %s1215 = scalar_lea.vmem %s1, 56
  %1216 = vst.msk [vmem:[%s1215] sm:$0xff] %vm1214, %v1213
  %s1217 = scalar_lea.vmem %s0, 1
  %s1218 = smov 3
  %v1219 = vld [vmem:[%s1217] ss:$16 sm:%s1218]
  %s1220 = scalar_lea.vmem %s0, 1
  %s1221 = smov 12
  %v1222 = vld [vmem:[%s1220] ss:$16 sm:%s1221]
  %vm1223 = vcmask 1043458
  %v1224 = vsel %vm1223, %v1222, %v1219
  %s1225 = scalar_lea.vmem %s0, 1
  %s1226 = smov 48
  %v1227 = vld [vmem:[%s1225] ss:$16 sm:%s1226]
  %vm1228 = vcmask 1045508
  %v1229 = vsel %vm1228, %v1227, %v1224
  %s1230 = scalar_lea.vmem %s0, 1
  %s1231 = smov 192
  %v1232 = vld [vmem:[%s1230] ss:$16 sm:%s1231]
  %vm1233 = vcmask 1047558
  %v1234 = vsel %vm1233, %v1232, %v1229
  %1235 = vrot.lane.b32.xlu0 %v1234, 16
  %v1236 = vpop.permute.xlu0 %1235
  %vm1237 = vcmask 261248
  %1238 = vst.msk [vmem:[%s1] sm:$0xff] %vm1237, %v1236
  %s1239 = scalar_lea.vmem %s0, 257
  %s1240 = smov 3
  %v1241 = vld [vmem:[%s1239] ss:$16 sm:%s1240]
  %s1242 = scalar_lea.vmem %s0, 257
  %s1243 = smov 12
  %v1244 = vld [vmem:[%s1242] ss:$16 sm:%s1243]
  %vm1245 = vcmask 1043458
  %v1246 = vsel %vm1245, %v1244, %v1241
  %s1247 = scalar_lea.vmem %s0, 257
  %s1248 = smov 48
  %v1249 = vld [vmem:[%s1247] ss:$16 sm:%s1248]
  %vm1250 = vcmask 1045508
  %v1251 = vsel %vm1250, %v1249, %v1246
  %s1252 = scalar_lea.vmem %s0, 257
  %s1253 = smov 192
  %v1254 = vld [vmem:[%s1252] ss:$16 sm:%s1253]
  %vm1255 = vcmask 1047558
  %v1256 = vsel %vm1255, %v1254, %v1251
  %1257 = vrot.lane.b32.xlu0 %v1256, 16
  %v1258 = vpop.permute.xlu0 %1257
  %vm1259 = vcmask 261248
  %s1260 = scalar_lea.vmem %s1, 32
  %1261 = vst.msk [vmem:[%s1260] sm:$0xff] %vm1259, %v1258
  %s1262 = scalar_lea.vmem %s0, 9
  %s1263 = smov 3
  %v1264 = vld [vmem:[%s1262] ss:$16 sm:%s1263]
  %s1265 = scalar_lea.vmem %s0, 9
  %s1266 = smov 12
  %v1267 = vld [vmem:[%s1265] ss:$16 sm:%s1266]
  %vm1268 = vcmask 1043458
  %v1269 = vsel %vm1268, %v1267, %v1264
  %s1270 = scalar_lea.vmem %s0, 9
  %s1271 = smov 48
  %v1272 = vld [vmem:[%s1270] ss:$16 sm:%s1271]
  %vm1273 = vcmask 1045508
  %v1274 = vsel %vm1273, %v1272, %v1269
  %s1275 = scalar_lea.vmem %s0, 9
  %s1276 = smov 192
  %v1277 = vld [vmem:[%s1275] ss:$16 sm:%s1276]
  %vm1278 = vcmask 1047558
  %v1279 = vsel %vm1278, %v1277, %v1274
  %1280 = vrot.lane.b32.xlu0 %v1279, 16
  %v1281 = vpop.permute.xlu0 %1280
  %vm1282 = vcmask 261248
  %s1283 = scalar_lea.vmem %s1, 8
  %1284 = vst.msk [vmem:[%s1283] sm:$0xff] %vm1282, %v1281
  %s1285 = scalar_lea.vmem %s0, 265
  %s1286 = smov 3
  %v1287 = vld [vmem:[%s1285] ss:$16 sm:%s1286]
  %s1288 = scalar_lea.vmem %s0, 265
  %s1289 = smov 12
  %v1290 = vld [vmem:[%s1288] ss:$16 sm:%s1289]
  %vm1291 = vcmask 1043458
  %v1292 = vsel %vm1291, %v1290, %v1287
  %s1293 = scalar_lea.vmem %s0, 265
  %s1294 = smov 48
  %v1295 = vld [vmem:[%s1293] ss:$16 sm:%s1294]
  %vm1296 = vcmask 1045508
  %v1297 = vsel %vm1296, %v1295, %v1292
  %s1298 = scalar_lea.vmem %s0, 265
  %s1299 = smov 192
  %v1300 = vld [vmem:[%s1298] ss:$16 sm:%s1299]
  %vm1301 = vcmask 1047558
  %v1302 = vsel %vm1301, %v1300, %v1297
  %1303 = vrot.lane.b32.xlu0 %v1302, 16
  %v1304 = vpop.permute.xlu0 %1303
  %vm1305 = vcmask 261248
  %s1306 = scalar_lea.vmem %s1, 40
  %1307 = vst.msk [vmem:[%s1306] sm:$0xff] %vm1305, %v1304
  %s1308 = scalar_lea.vmem %s0, 129
  %s1309 = smov 3
  %v1310 = vld [vmem:[%s1308] ss:$16 sm:%s1309]
  %s1311 = scalar_lea.vmem %s0, 129
  %s1312 = smov 12
  %v1313 = vld [vmem:[%s1311] ss:$16 sm:%s1312]
  %vm1314 = vcmask 1043458
  %v1315 = vsel %vm1314, %v1313, %v1310
  %s1316 = scalar_lea.vmem %s0, 129
  %s1317 = smov 48
  %v1318 = vld [vmem:[%s1316] ss:$16 sm:%s1317]
  %vm1319 = vcmask 1045508
  %v1320 = vsel %vm1319, %v1318, %v1315
  %s1321 = scalar_lea.vmem %s0, 129
  %s1322 = smov 192
  %v1323 = vld [vmem:[%s1321] ss:$16 sm:%s1322]
  %vm1324 = vcmask 1047558
  %v1325 = vsel %vm1324, %v1323, %v1320
  %1326 = vrot.lane.b32.xlu0 %v1325, 16
  %v1327 = vpop.permute.xlu0 %1326
  %vm1328 = vcmask 261248
  %s1329 = scalar_lea.vmem %s1, 16
  %1330 = vst.msk [vmem:[%s1329] sm:$0xff] %vm1328, %v1327
  %s1331 = scalar_lea.vmem %s0, 385
  %s1332 = smov 3
  %v1333 = vld [vmem:[%s1331] ss:$16 sm:%s1332]
  %s1334 = scalar_lea.vmem %s0, 385
  %s1335 = smov 12
  %v1336 = vld [vmem:[%s1334] ss:$16 sm:%s1335]
  %vm1337 = vcmask 1043458
  %v1338 = vsel %vm1337, %v1336, %v1333
  %s1339 = scalar_lea.vmem %s0, 385
  %s1340 = smov 48
  %v1341 = vld [vmem:[%s1339] ss:$16 sm:%s1340]
  %vm1342 = vcmask 1045508
  %v1343 = vsel %vm1342, %v1341, %v1338
  %s1344 = scalar_lea.vmem %s0, 385
  %s1345 = smov 192
  %v1346 = vld [vmem:[%s1344] ss:$16 sm:%s1345]
  %vm1347 = vcmask 1047558
  %v1348 = vsel %vm1347, %v1346, %v1343
  %1349 = vrot.lane.b32.xlu0 %v1348, 16
  %v1350 = vpop.permute.xlu0 %1349
  %vm1351 = vcmask 261248
  %s1352 = scalar_lea.vmem %s1, 48
  %1353 = vst.msk [vmem:[%s1352] sm:$0xff] %vm1351, %v1350
  %s1354 = scalar_lea.vmem %s0, 137
  %s1355 = smov 3
  %v1356 = vld [vmem:[%s1354] ss:$16 sm:%s1355]
  %s1357 = scalar_lea.vmem %s0, 137
  %s1358 = smov 12
  %v1359 = vld [vmem:[%s1357] ss:$16 sm:%s1358]
  %vm1360 = vcmask 1043458
  %v1361 = vsel %vm1360, %v1359, %v1356
  %s1362 = scalar_lea.vmem %s0, 137
  %s1363 = smov 48
  %v1364 = vld [vmem:[%s1362] ss:$16 sm:%s1363]
  %vm1365 = vcmask 1045508
  %v1366 = vsel %vm1365, %v1364, %v1361
  %s1367 = scalar_lea.vmem %s0, 137
  %s1368 = smov 192
  %v1369 = vld [vmem:[%s1367] ss:$16 sm:%s1368]
  %vm1370 = vcmask 1047558
  %v1371 = vsel %vm1370, %v1369, %v1366
  %1372 = vrot.lane.b32.xlu0 %v1371, 16
  %v1373 = vpop.permute.xlu0 %1372
  %vm1374 = vcmask 261248
  %s1375 = scalar_lea.vmem %s1, 24
  %1376 = vst.msk [vmem:[%s1375] sm:$0xff] %vm1374, %v1373
  %s1377 = scalar_lea.vmem %s0, 393
  %s1378 = smov 3
  %v1379 = vld [vmem:[%s1377] ss:$16 sm:%s1378]
  %s1380 = scalar_lea.vmem %s0, 393
  %s1381 = smov 12
  %v1382 = vld [vmem:[%s1380] ss:$16 sm:%s1381]
  %vm1383 = vcmask 1043458
  %v1384 = vsel %vm1383, %v1382, %v1379
  %s1385 = scalar_lea.vmem %s0, 393
  %s1386 = smov 48
  %v1387 = vld [vmem:[%s1385] ss:$16 sm:%s1386]
  %vm1388 = vcmask 1045508
  %v1389 = vsel %vm1388, %v1387, %v1384
  %s1390 = scalar_lea.vmem %s0, 393
  %s1391 = smov 192
  %v1392 = vld [vmem:[%s1390] ss:$16 sm:%s1391]
  %vm1393 = vcmask 1047558
  %v1394 = vsel %vm1393, %v1392, %v1389
  %1395 = vrot.lane.b32.xlu0 %v1394, 16
  %v1396 = vpop.permute.xlu0 %1395
  %vm1397 = vcmask 261248
  %s1398 = scalar_lea.vmem %s1, 56
  %1399 = vst.msk [vmem:[%s1398] sm:$0xff] %vm1397, %v1396

// kernel: ncc_pallas.1
$region0: #{ncc_pallas.1}
  #allocation0 [shape = 'u32[]', space=smem, size = 0x4, offset = 0x4, fixed_abs, tag = 'smem constant byte address 0x4 - core index']
  #allocation1 [shape = 'u32[72,128]{1,0:T(1,128)}', space=vmem, size = 0x9000, scoped, tag = 'internal scratch']
  %s0 = inlined_call_operand.vmem [shape: f32[2,16,256], index: 0, kind: input, shape index: {}]
  %s1 = inlined_call_operand.vmem [shape: f32[2,16,256], index: 1, kind: input, shape index: {}]
  %s2 = inlined_call_operand.vmem [shape: f32[256,256], index: 2, kind: input, shape index: {}]
  %s3 = inlined_call_operand.vmem [shape: f32[80,80], index: 3, kind: input, shape index: {}]
  %s4 = inlined_call_operand.vmem [shape: f32[2,1,1], index: 4, kind: output, shape index: {}]
  %s5 = sld [smem:[#allocation0]]
  $region49: #{ncc_pallas.1} parent=0
    _
  %s7 = ssub.s32 1, %s5
  %s8 = scalar_select 0, %s7, %s5
  loop: start=0, step=1, limit=4
  $region2: #{ncc_pallas.1} parent=0 // loop_pre_header
    _
  $region3: #{ncc_pallas.1} parent=0 // loop_header
    %s10 = sphi 0, %s14
    %p11 = scmp.ge.s32.totalorder %s10, 4
    %s20 = sphi 0, %s22
    %s23 = sphi 0, %s20
    %s24 = sphi 0, %s23
    %s40 = sphi 0, %s24
    %s46 = sphi 0, %s48
    %s49 = sphi 0, %s46
    %s50 = sphi 0, %s49
    %s66 = sphi 0, %s50
    %s70 = sphi 0, %s70
    %s72 = sphi 0, %s70
    %s73 = sphi 0, %s72
    %s87 = sphi 0, %s73
    %s91 = sphi 0, %s91
    %s93 = sphi 0, %s91
    %s94 = sphi 0, %s93
    %s108 = sphi 0, %s94
    %s114 = sphi 0, %s116
    %s117 = sphi 0, %s114
    %s118 = sphi 0, %s117
    %s134 = sphi 0, %s118
  $region4: #{ncc_pallas.1} parent=0 // loop_header_branch
    %13 = sbr.rel (%p11) target = $region8
  $region5: #{ncc_pallas.1} parent=0 // loop_body
    %s15 = ssub.s32 %s10, 1
    %s16 = ssub.s32 %s10, 2
    %s17 = sadd.s32 %s10, 1
    %s18 = ssub.s32 %s10, %s17
    %p19 = scmp.eq.s32.totalorder %s18, 0
    %s21 = sadd.s32 %s20, 1
    %s22 = scalar_select %p19, %s20, %s21
    %p25 = pneg %p19
    %p26 = scmp.eq.s32.totalorder %s10, 1
    %p27 = por %p25, %p26
    %p28 = scmp.ne.s32.totalorder %s20, %s23
    %p29 = scmp.eq.s32.totalorder %s10, 0
    %p30 = por %p28, %p29
    %p31 = scmp.ne.s32.totalorder %s20, %s23
    %p32 = scmp.eq.s32.totalorder %s15, 1
    %p33 = por %p31, %p32
    %p34 = scmp.ne.s32.totalorder %s23, %s24
    %p35 = scmp.eq.s32.totalorder %s15, 0
    %p36 = por %p34, %p35
    %p37 = scmp.ne.s32.totalorder %s23, %s24
    %p38 = scmp.eq.s32.totalorder %s16, 1
    %p39 = por %p37, %p38
    %p41 = scmp.ne.s32.totalorder %s24, %s40
    %p42 = scmp.eq.s32.totalorder %s16, 0
    %p43 = por %p41, %p42
    %s44 = ssub.s32 %s10, %s17
    %p45 = scmp.eq.s32.totalorder %s44, 0
    %s47 = sadd.s32 %s46, 1
    %s48 = scalar_select %p45, %s46, %s47
    %p51 = pneg %p45
    %p52 = scmp.eq.s32.totalorder %s10, 1
    %p53 = por %p51, %p52
    %p54 = scmp.ne.s32.totalorder %s46, %s49
    %p55 = scmp.eq.s32.totalorder %s10, 0
    %p56 = por %p54, %p55
    %p57 = scmp.ne.s32.totalorder %s46, %s49
    %p58 = scmp.eq.s32.totalorder %s15, 1
    %p59 = por %p57, %p58
    %p60 = scmp.ne.s32.totalorder %s49, %s50
    %p61 = scmp.eq.s32.totalorder %s15, 0
    %p62 = por %p60, %p61
    %p63 = scmp.ne.s32.totalorder %s49, %s50
    %p64 = scmp.eq.s32.totalorder %s16, 1
    %p65 = por %p63, %p64
    %p67 = scmp.ne.s32.totalorder %s50, %s66
    %p68 = scmp.eq.s32.totalorder %s16, 0
    %p69 = por %p67, %p68
    %s71 = sadd.s32 %s70, 1
    %p74 = scmp.eq.s32.totalorder %s10, 1
    %p75 = scmp.ne.s32.totalorder %s70, %s72
    %p76 = scmp.eq.s32.totalorder %s10, 0
    %p77 = por %p75, %p76
    %p78 = scmp.ne.s32.totalorder %s70, %s72
    %p79 = scmp.eq.s32.totalorder %s15, 1
    %p80 = por %p78, %p79
    %p81 = scmp.ne.s32.totalorder %s72, %s73
    %p82 = scmp.eq.s32.totalorder %s15, 0
    %p83 = por %p81, %p82
    %p84 = scmp.ne.s32.totalorder %s72, %s73
    %p85 = scmp.eq.s32.totalorder %s16, 1
    %p86 = por %p84, %p85
    %p88 = scmp.ne.s32.totalorder %s73, %s87
    %p89 = scmp.eq.s32.totalorder %s16, 0
    %p90 = por %p88, %p89
    %s92 = sadd.s32 %s91, 1
    %p95 = scmp.eq.s32.totalorder %s10, 1
    %p96 = scmp.ne.s32.totalorder %s91, %s93
    %p97 = scmp.eq.s32.totalorder %s10, 0
    %p98 = por %p96, %p97
    %p99 = scmp.ne.s32.totalorder %s91, %s93
    %p100 = scmp.eq.s32.totalorder %s15, 1
    %p101 = por %p99, %p100
    %p102 = scmp.ne.s32.totalorder %s93, %s94
    %p103 = scmp.eq.s32.totalorder %s15, 0
    %p104 = por %p102, %p103
    %p105 = scmp.ne.s32.totalorder %s93, %s94
    %p106 = scmp.eq.s32.totalorder %s16, 1
    %p107 = por %p105, %p106
    %p109 = scmp.ne.s32.totalorder %s94, %s108
    %p110 = scmp.eq.s32.totalorder %s16, 0
    %p111 = por %p109, %p110
    %s112 = ssub.s32 %s10, %s17
    %p113 = scmp.eq.s32.totalorder %s112, 0
    %s115 = sadd.s32 %s114, 1
    %s116 = scalar_select %p113, %s114, %s115
    %p119 = pneg %p113
    %p120 = scmp.eq.s32.totalorder %s10, 1
    %p121 = por %p119, %p120
    %p122 = scmp.ne.s32.totalorder %s114, %s117
    %p123 = scmp.eq.s32.totalorder %s10, 0
    %p124 = por %p122, %p123
    %p125 = scmp.ne.s32.totalorder %s114, %s117
    %p126 = scmp.eq.s32.totalorder %s15, 1
    %p127 = por %p125, %p126
    %p128 = scmp.ne.s32.totalorder %s117, %s118
    %p129 = scmp.eq.s32.totalorder %s15, 0
    %p130 = por %p128, %p129
    %p131 = scmp.ne.s32.totalorder %s117, %s118
    %p132 = scmp.eq.s32.totalorder %s16, 1
    %p133 = por %p131, %p132
    %p135 = scmp.ne.s32.totalorder %s118, %s134
    %p136 = scmp.eq.s32.totalorder %s16, 0
    %p137 = por %p135, %p136
    %p138 = scmp.le.s32.totalorder 1, %s10
    %p139 = scmp.lt.s32.totalorder %s10, 3
    %p140 = pnand %p138, %p139
    %p141 = pneg %p140
    // Predicated region
    $region9: #{ncc_pallas.1} parent=5 // pred_check
      _
    $region10: #{ncc_pallas.1} parent=5 // pred_check_branch
      %143 = sbr.rel (%p140) target = $region12
    $region11: #{ncc_pallas.1} parent=5 // pred_region
      %s144 = ssub.s32 %s10, 1
      // Predicated region
      $region13: #{ncc_pallas.1} parent=11 // pred_check
        %p145 = pneg %p83
      $region14: #{ncc_pallas.1} parent=11 // pred_check_branch
        %147 = sbr.rel (%p145) target = $region16
      $region15: #{ncc_pallas.1} parent=11 // pred_region
        _
      $region16: #{ncc_pallas.1} parent=11 // pred_fallthru
        _
      // Predicated region
      $region17: #{ncc_pallas.1} parent=11 // pred_check
        %p148 = pneg %p104
      $region18: #{ncc_pallas.1} parent=11 // pred_check_branch
        %150 = sbr.rel (%p148) target = $region20
      $region19: #{ncc_pallas.1} parent=11 // pred_region
        _
      $region20: #{ncc_pallas.1} parent=11 // pred_fallthru
        _
    $region12: #{ncc_pallas.1} parent=5 // pred_fallthru
      _
    %p151 = scmp.lt.s32.totalorder %s10, 2
    // Predicated region
    $region21: #{ncc_pallas.1} parent=5 // pred_check
      %p152 = pneg %p151
    $region22: #{ncc_pallas.1} parent=5 // pred_check_branch
      %154 = sbr.rel (%p152) target = $region24
    $region23: #{ncc_pallas.1} parent=5 // pred_region
      // Predicated region
      $region25: #{ncc_pallas.1} parent=23 // pred_check
        %p155 = pneg %p30
      $region26: #{ncc_pallas.1} parent=23 // pred_check_branch
        %157 = sbr.rel (%p155) target = $region28
      $region27: #{ncc_pallas.1} parent=23 // pred_region
        %p158 = scmp.lt.s32.totalorder %s10, 1
        %s159 = scalar_select %p158, %s10, 1
        %s160 = smul.addr %s159, 4
        %s161 = smul.addr %s160, 8
        %s162 = scalar_lea.vmem %s0, %s161
      $region28: #{ncc_pallas.1} parent=23 // pred_fallthru
        _
      // Predicated region
      $region29: #{ncc_pallas.1} parent=23 // pred_check
        %p163 = pneg %p56
      $region30: #{ncc_pallas.1} parent=23 // pred_check_branch
        %165 = sbr.rel (%p163) target = $region32
      $region31: #{ncc_pallas.1} parent=23 // pred_region
        %p166 = scmp.lt.s32.totalorder %s10, 1
        %s167 = scalar_select %p166, %s10, 1
        %s168 = smul.addr %s167, 4
        %s169 = smul.addr %s168, 8
        %s170 = scalar_lea.vmem %s1, %s169
      $region32: #{ncc_pallas.1} parent=23 // pred_fallthru
        _
    $region24: #{ncc_pallas.1} parent=5 // pred_fallthru
      _
    %p171 = scmp.le.s32.totalorder 1, %s10
    %p172 = scmp.lt.s32.totalorder %s10, 3
    %p173 = pnand %p171, %p172
    %p174 = pneg %p173
    // Predicated region
    $region33: #{ncc_pallas.1} parent=5 // pred_check
      _
    $region34: #{ncc_pallas.1} parent=5 // pred_check_branch
      %176 = sbr.rel (%p173) target = $region36
    $region35: #{ncc_pallas.1} parent=5 // pred_region
      %s177 = ssub.s32 %s10, 1
      %p178 = scmp.lt.s32.totalorder %s15, 1
      %s179 = scalar_select %p178, %s15, 1
      %s180 = smul.addr %s179, 4
      %s181 = smul.addr %s180, 8
      %s182 = scalar_lea.vmem %s0, %s181
      %p183 = pneg %p36
      %p184 = pneg %p33
      %p185 = scmp.lt.s32.totalorder %s15, 1
      %s186 = scalar_select %p185, %s15, 1
      %s187 = smul.addr %s186, 4
      %s188 = smul.addr %s187, 8
      %s189 = scalar_lea.vmem %s1, %s188
      %p190 = pneg %p62
      %p191 = pneg %p59
      %p192 = pneg %p83
      %p193 = pneg %p80
      %p194 = pneg %p104
      %p195 = pneg %p101
      %p196 = pneg %p130
      %p197 = pneg %p127
      %p198 = scmp.lt.s32.totalorder %s15, 1
      %s199 = scalar_select %p198, %s15, 1
      %s200 = scalar_lea.vmem %s4, %s199
      %p201 = scmp.lt.s32.totalorder %s15, 1
      %s202 = scalar_select %p201, %s15, 1
      %s203 = smul.addr %s202, 4
      %s204 = smul.addr %s203, 8
      %s205 = scalar_lea.vmem %s0, %s204
      %p206 = scmp.lt.s32.totalorder %s15, 1
      %s207 = scalar_select %p206, %s15, 1
      %s208 = smul.addr %s207, 4
      %s209 = smul.addr %s208, 8
      %s210 = scalar_lea.vmem %s1, %s209
      %p211 = scmp.lt.s32.totalorder %s15, 1
      %s212 = scalar_select %p211, %s15, 1
      %s213 = scalar_lea.vmem %s4, %s212
      %v214 = vld [vmem:[%s205] sm:$0xff]
      %v215 = vld [vmem:[%s205 + $0x8] sm:$0xff]
      %v216 = vld [vmem:[%s205 + $0x10] sm:$0xff]
      %v217 = vld [vmem:[%s205 + $0x18] sm:$0xff]
      %v218 = vld [vmem:[%s210] sm:$0xff]
      %v219 = vld [vmem:[%s210 + $0x8] sm:$0xff]
      %v220 = vld [vmem:[%s210 + $0x10] sm:$0xff]
      %v221 = vld [vmem:[%s210 + $0x18] sm:$0xff]
      %v222 = vmul.f32 %v214, %v214
      %v223 = vmul.f32 %v215, %v215
      %v224 = vmul.f32 %v216, %v216
      %v225 = vmul.f32 %v217, %v217
      %v226 = vmul.f32 %v218, %v218
      %v227 = vmul.f32 %v219, %v219
      %v228 = vmul.f32 %v220, %v220
      %v229 = vmul.f32 %v221, %v221
      %v230 = vmul.f32 %v214, %v218
      %v231 = vmul.f32 %v215, %v219
      %v232 = vmul.f32 %v216, %v220
      %v233 = vmul.f32 %v217, %v221
      %v234 = vld [vmem:[%s2] sm:$0xff]
      %v235 = vld [vmem:[%s2 + $0x8] sm:$0xff]
      %v236 = vld [vmem:[%s2 + $0x10] sm:$0xff]
      %v237 = vld [vmem:[%s2 + $0x18] sm:$0xff]
      %v238 = vld [vmem:[%s2 + $0x20] sm:$0xff]
      %v239 = vld [vmem:[%s2 + $0x28] sm:$0xff]
      %v240 = vld [vmem:[%s2 + $0x30] sm:$0xff]
      %v241 = vld [vmem:[%s2 + $0x38] sm:$0xff]
      %v242 = vld [vmem:[%s2 + $0x40] sm:$0xff]
      %v243 = vld [vmem:[%s2 + $0x48] sm:$0xff]
      %v244 = vld [vmem:[%s2 + $0x50] sm:$0xff]
      %v245 = vld [vmem:[%s2 + $0x58] sm:$0xff]
      %v246 = vld [vmem:[%s2 + $0x60] sm:$0xff]
      %v247 = vld [vmem:[%s2 + $0x68] sm:$0xff]
      %v248 = vld [vmem:[%s2 + $0x70] sm:$0xff]
      %v249 = vld [vmem:[%s2 + $0x78] sm:$0xff]
      %v250 = vld [vmem:[%s2 + $0x80] sm:$0xff]
      %v251 = vld [vmem:[%s2 + $0x88] sm:$0xff]
      %v252 = vld [vmem:[%s2 + $0x90] sm:$0xff]
      %v253 = vld [vmem:[%s2 + $0x98] sm:$0xff]
      %v254 = vld [vmem:[%s2 + $0xa0] sm:$0xff]
      %v255 = vld [vmem:[%s2 + $0xa8] sm:$0xff]
      %v256 = vld [vmem:[%s2 + $0xb0] sm:$0xff]
      %v257 = vld [vmem:[%s2 + $0xb8] sm:$0xff]
      %v258 = vld [vmem:[%s2 + $0xc0] sm:$0xff]
      %v259 = vld [vmem:[%s2 + $0xc8] sm:$0xff]
      %v260 = vld [vmem:[%s2 + $0xd0] sm:$0xff]
      %v261 = vld [vmem:[%s2 + $0xd8] sm:$0xff]
      %v262 = vld [vmem:[%s2 + $0xe0] sm:$0xff]
      %v263 = vld [vmem:[%s2 + $0xe8] sm:$0xff]
      %v264 = vld [vmem:[%s2 + $0xf0] sm:$0xff]
      %v265 = vld [vmem:[%s2 + $0xf8] sm:$0xff]
      %v266 = vld [vmem:[%s2 + $0x100] sm:$0xff]
      %v267 = vld [vmem:[%s2 + $0x108] sm:$0xff]
      %v268 = vld [vmem:[%s2 + $0x110] sm:$0xff]
      %v269 = vld [vmem:[%s2 + $0x118] sm:$0xff]
      %v270 = vld [vmem:[%s2 + $0x120] sm:$0xff]
      %v271 = vld [vmem:[%s2 + $0x128] sm:$0xff]
      %v272 = vld [vmem:[%s2 + $0x130] sm:$0xff]
      %v273 = vld [vmem:[%s2 + $0x138] sm:$0xff]
      %v274 = vld [vmem:[%s2 + $0x140] sm:$0xff]
      %v275 = vld [vmem:[%s2 + $0x148] sm:$0xff]
      %v276 = vld [vmem:[%s2 + $0x150] sm:$0xff]
      %v277 = vld [vmem:[%s2 + $0x158] sm:$0xff]
      %v278 = vld [vmem:[%s2 + $0x160] sm:$0xff]
      %v279 = vld [vmem:[%s2 + $0x168] sm:$0xff]
      %v280 = vld [vmem:[%s2 + $0x170] sm:$0xff]
      %v281 = vld [vmem:[%s2 + $0x178] sm:$0xff]
      %v282 = vld [vmem:[%s2 + $0x180] sm:$0xff]
      %v283 = vld [vmem:[%s2 + $0x188] sm:$0xff]
      %v284 = vld [vmem:[%s2 + $0x190] sm:$0xff]
      %v285 = vld [vmem:[%s2 + $0x198] sm:$0xff]
      %v286 = vld [vmem:[%s2 + $0x1a0] sm:$0xff]
      %v287 = vld [vmem:[%s2 + $0x1a8] sm:$0xff]
      %v288 = vld [vmem:[%s2 + $0x1b0] sm:$0xff]
      %v289 = vld [vmem:[%s2 + $0x1b8] sm:$0xff]
      %v290 = vld [vmem:[%s2 + $0x1c0] sm:$0xff]
      %v291 = vld [vmem:[%s2 + $0x1c8] sm:$0xff]
      %v292 = vld [vmem:[%s2 + $0x1d0] sm:$0xff]
      %v293 = vld [vmem:[%s2 + $0x1d8] sm:$0xff]
      %v294 = vld [vmem:[%s2 + $0x1e0] sm:$0xff]
      %v295 = vld [vmem:[%s2 + $0x1e8] sm:$0xff]
      %v296 = vld [vmem:[%s2 + $0x1f0] sm:$0xff]
      %v297 = vld [vmem:[%s2 + $0x1f8] sm:$0xff]
      %298 = vmatpush.msra.mxu0 %v264
      %299 = vmatpush.msra.mxu0 %v262
      %300 = vmatpush.msra.mxu0 %v260
      %301 = vmatpush.msra.mxu0 %v258
      %302 = vmatpush.msra.mxu0 %v256
      %303 = vmatpush.msra.mxu0 %v254
      %304 = vmatpush.msra.mxu0 %v252
      %305 = vmatpush.msra.mxu0 %v250
      %306 = vmatpush.msra.mxu0 %v248
      %307 = vmatpush.msra.mxu0 %v246
      %308 = vmatpush.msra.mxu0 %v244
      %309 = vmatpush.msra.mxu0 %v242
      %310 = vmatpush.msra.mxu0 %v240
      %311 = vmatpush.msra.mxu0 %v238
      %312 = vmatpush.msra.mxu0 %v236
      %313 = vmatpush.msra.mxu0 %v234
      %314 = vmatmul.f32.gmra.mxu0 %v214
      %v315 = vpop.f32.mrf.mxu0
      %v316 = vadd.f32 0.0, %v315
      %317 = vmatmul.f32.gmra.mxu0 %v216
      %v318 = vpop.f32.mrf.mxu0
      %v319 = vadd.f32 0.0, %v318
      %320 = vmatmul.f32.gmra.mxu0 %v218
      %v321 = vpop.f32.mrf.mxu0
      %v322 = vadd.f32 0.0, %v321
      %323 = vmatmul.f32.gmra.mxu0 %v220
      %v324 = vpop.f32.mrf.mxu0
      %v325 = vadd.f32 0.0, %v324
      %326 = vmatmul.f32.gmra.mxu0 %v222
      %v327 = vpop.f32.mrf.mxu0
      %v328 = vadd.f32 0.0, %v327
      %329 = vmatmul.f32.gmra.mxu0 %v224
      %v330 = vpop.f32.mrf.mxu0
      %v331 = vadd.f32 0.0, %v330
      %332 = vmatmul.f32.gmra.mxu0 %v226
      %v333 = vpop.f32.mrf.mxu0
      %v334 = vadd.f32 0.0, %v333
      %335 = vmatmul.f32.gmra.mxu0 %v228
      %v336 = vpop.f32.mrf.mxu0
      %v337 = vadd.f32 0.0, %v336
      %338 = vmatmul.f32.gmra.mxu0 %v230
      %v339 = vpop.f32.mrf.mxu0
      %v340 = vadd.f32 0.0, %v339
      %341 = vmatmul.f32.gmra.mxu0 %v232
      %v342 = vpop.f32.mrf.mxu0
      %v343 = vadd.f32 0.0, %v342
      %344 = vdwg.mxu0
      %345 = vmatpush.msra.mxu0 %v296
      %346 = vmatpush.msra.mxu0 %v294
      %347 = vmatpush.msra.mxu0 %v292
      %348 = vmatpush.msra.mxu0 %v290
      %349 = vmatpush.msra.mxu0 %v288
      %350 = vmatpush.msra.mxu0 %v286
      %351 = vmatpush.msra.mxu0 %v284
      %352 = vmatpush.msra.mxu0 %v282
      %353 = vmatpush.msra.mxu0 %v280
      %354 = vmatpush.msra.mxu0 %v278
      %355 = vmatpush.msra.mxu0 %v276
      %356 = vmatpush.msra.mxu0 %v274
      %357 = vmatpush.msra.mxu0 %v272
      %358 = vmatpush.msra.mxu0 %v270
      %359 = vmatpush.msra.mxu0 %v268
      %360 = vmatpush.msra.mxu0 %v266
      %361 = vmatmul.f32.gmra.mxu0 %v215
      %v362 = vpop.f32.mrf.mxu0
      %v363 = vadd.f32 %v316, %v362
      %364 = vmatmul.f32.gmra.mxu0 %v217
      %v365 = vpop.f32.mrf.mxu0
      %v366 = vadd.f32 %v319, %v365
      %367 = vmatmul.f32.gmra.mxu0 %v219
      %v368 = vpop.f32.mrf.mxu0
      %v369 = vadd.f32 %v322, %v368
      %370 = vmatmul.f32.gmra.mxu0 %v221
      %v371 = vpop.f32.mrf.mxu0
      %v372 = vadd.f32 %v325, %v371
      %373 = vmatmul.f32.gmra.mxu0 %v223
      %v374 = vpop.f32.mrf.mxu0
      %v375 = vadd.f32 %v328, %v374
      %376 = vmatmul.f32.gmra.mxu0 %v225
      %v377 = vpop.f32.mrf.mxu0
      %v378 = vadd.f32 %v331, %v377
      %379 = vmatmul.f32.gmra.mxu0 %v227
      %v380 = vpop.f32.mrf.mxu0
      %v381 = vadd.f32 %v334, %v380
      %382 = vmatmul.f32.gmra.mxu0 %v229
      %v383 = vpop.f32.mrf.mxu0
      %v384 = vadd.f32 %v337, %v383
      %385 = vmatmul.f32.gmra.mxu0 %v231
      %v386 = vpop.f32.mrf.mxu0
      %v387 = vadd.f32 %v340, %v386
      %388 = vmatmul.f32.gmra.mxu0 %v233
      %v389 = vpop.f32.mrf.mxu0
      %v390 = vadd.f32 %v343, %v389
      %391 = vdwg.mxu0
      %392 = vmatpush.msra.mxu0 %v265
      %393 = vmatpush.msra.mxu0 %v263
      %394 = vmatpush.msra.mxu0 %v261
      %395 = vmatpush.msra.mxu0 %v259
      %396 = vmatpush.msra.mxu0 %v257
      %397 = vmatpush.msra.mxu0 %v255
      %398 = vmatpush.msra.mxu0 %v253
      %399 = vmatpush.msra.mxu0 %v251
      %400 = vmatpush.msra.mxu0 %v249
      %401 = vmatpush.msra.mxu0 %v247
      %402 = vmatpush.msra.mxu0 %v245
      %403 = vmatpush.msra.mxu0 %v243
      %404 = vmatpush.msra.mxu0 %v241
      %405 = vmatpush.msra.mxu0 %v239
      %406 = vmatpush.msra.mxu0 %v237
      %407 = vmatpush.msra.mxu0 %v235
      %408 = vmatmul.f32.gmra.mxu0 %v214
      %v409 = vpop.f32.mrf.mxu0
      %v410 = vadd.f32 0.0, %v409
      %411 = vmatmul.f32.gmra.mxu0 %v216
      %v412 = vpop.f32.mrf.mxu0
      %v413 = vadd.f32 0.0, %v412
      %414 = vmatmul.f32.gmra.mxu0 %v218
      %v415 = vpop.f32.mrf.mxu0
      %v416 = vadd.f32 0.0, %v415
      %417 = vmatmul.f32.gmra.mxu0 %v220
      %v418 = vpop.f32.mrf.mxu0
      %v419 = vadd.f32 0.0, %v418
      %420 = vmatmul.f32.gmra.mxu0 %v222
      %v421 = vpop.f32.mrf.mxu0
      %v422 = vadd.f32 0.0, %v421
      %423 = vmatmul.f32.gmra.mxu0 %v224
      %v424 = vpop.f32.mrf.mxu0
      %v425 = vadd.f32 0.0, %v424
      %426 = vmatmul.f32.gmra.mxu0 %v226
      %v427 = vpop.f32.mrf.mxu0
      %v428 = vadd.f32 0.0, %v427
      %429 = vmatmul.f32.gmra.mxu0 %v228
      %v430 = vpop.f32.mrf.mxu0
      %v431 = vadd.f32 0.0, %v430
      %432 = vmatmul.f32.gmra.mxu0 %v230
      %v433 = vpop.f32.mrf.mxu0
      %v434 = vadd.f32 0.0, %v433
      %435 = vmatmul.f32.gmra.mxu0 %v232
      %v436 = vpop.f32.mrf.mxu0
      %v437 = vadd.f32 0.0, %v436
      %438 = vdwg.mxu0
      %439 = vmatpush.msra.mxu0 %v297
      %440 = vmatpush.msra.mxu0 %v295
      %441 = vmatpush.msra.mxu0 %v293
      %442 = vmatpush.msra.mxu0 %v291
      %443 = vmatpush.msra.mxu0 %v289
      %444 = vmatpush.msra.mxu0 %v287
      %445 = vmatpush.msra.mxu0 %v285
      %446 = vmatpush.msra.mxu0 %v283
      %447 = vmatpush.msra.mxu0 %v281
      %448 = vmatpush.msra.mxu0 %v279
      %449 = vmatpush.msra.mxu0 %v277
      %450 = vmatpush.msra.mxu0 %v275
      %451 = vmatpush.msra.mxu0 %v273
      %452 = vmatpush.msra.mxu0 %v271
      %453 = vmatpush.msra.mxu0 %v269
      %454 = vmatpush.msra.mxu0 %v267
      %455 = vmatmul.f32.gmra.mxu0 %v215
      %v456 = vpop.f32.mrf.mxu0
      %v457 = vadd.f32 %v410, %v456
      %458 = vmatmul.f32.gmra.mxu0 %v217
      %v459 = vpop.f32.mrf.mxu0
      %v460 = vadd.f32 %v413, %v459
      %461 = vmatmul.f32.gmra.mxu0 %v219
      %v462 = vpop.f32.mrf.mxu0
      %v463 = vadd.f32 %v416, %v462
      %464 = vmatmul.f32.gmra.mxu0 %v221
      %v465 = vpop.f32.mrf.mxu0
      %v466 = vadd.f32 %v419, %v465
      %467 = vmatmul.f32.gmra.mxu0 %v223
      %v468 = vpop.f32.mrf.mxu0
      %v469 = vadd.f32 %v422, %v468
      %470 = vmatmul.f32.gmra.mxu0 %v225
      %v471 = vpop.f32.mrf.mxu0
      %v472 = vadd.f32 %v425, %v471
      %473 = vmatmul.f32.gmra.mxu0 %v227
      %v474 = vpop.f32.mrf.mxu0
      %v475 = vadd.f32 %v428, %v474
      %476 = vmatmul.f32.gmra.mxu0 %v229
      %v477 = vpop.f32.mrf.mxu0
      %v478 = vadd.f32 %v431, %v477
      %479 = vmatmul.f32.gmra.mxu0 %v231
      %v480 = vpop.f32.mrf.mxu0
      %v481 = vadd.f32 %v434, %v480
      %482 = vmatmul.f32.gmra.mxu0 %v233
      %v483 = vpop.f32.mrf.mxu0
      %v484 = vadd.f32 %v437, %v483
      %485 = vdwg.mxu0
      %v486 = vld [vmem:[%s3] sm:$0xff]
      %v487 = vld [vmem:[%s3 + $0x8] sm:$0xff]
      %v488 = vld [vmem:[%s3 + $0x10] sm:$0xff]
      %v489 = vld [vmem:[%s3 + $0x18] sm:$0xff]
      %v490 = vld [vmem:[%s3 + $0x20] sm:$0xff]
      %v491 = vld [vmem:[%s3 + $0x28] sm:$0xff]
      %v492 = vld [vmem:[%s3 + $0x30] sm:$0xff]
      %v493 = vld [vmem:[%s3 + $0x38] sm:$0xff]
      %v494 = vld [vmem:[%s3 + $0x40] sm:$0xff]
      %v495 = vld [vmem:[%s3 + $0x48] sm:$0xff]
      %vm496 = vcmask 654336
      %v498 = vsel %vm496, %v486, 0
      %v501 = vsel %vm496, %v487, 0
      %v504 = vsel %vm496, %v488, 0
      %v507 = vsel %vm496, %v489, 0
      %v510 = vsel %vm496, %v490, 0
      %v513 = vsel %vm496, %v491, 0
      %v516 = vsel %vm496, %v492, 0
      %v519 = vsel %vm496, %v493, 0
      %v522 = vsel %vm496, %v494, 0
      %v525 = vsel %vm496, %v495, 0
      %527 = vmatpush.msra.mxu0 0.0
      %528 = vmatpush.msra.mxu0 0.0
      %529 = vmatpush.msra.mxu0 0.0
      %530 = vmatpush.msra.mxu0 0.0
      %531 = vmatpush.msra.mxu0 0.0
      %532 = vmatpush.msra.mxu0 0.0
      %533 = vmatpush.msra.mxu0 %v390
      %534 = vmatpush.msra.mxu0 %v387
      %535 = vmatpush.msra.mxu0 %v384
      %536 = vmatpush.msra.mxu0 %v381
      %537 = vmatpush.msra.mxu0 %v378
      %538 = vmatpush.msra.mxu0 %v375
      %539 = vmatpush.msra.mxu0 %v372
      %540 = vmatpush.msra.mxu0 %v369
      %541 = vmatpush.msra.mxu0 %v366
      %542 = vmatpush.msra.mxu0 %v363
      %543 = vmatmul.f32.gmra.mxu0 %v498
      %v544 = vpop.f32.mrf.mxu0
      %v545 = vadd.f32 0.0, %v544
      %546 = vmatmul.f32.gmra.mxu0 %v501
      %v547 = vpop.f32.mrf.mxu0
      %v548 = vadd.f32 0.0, %v547
      %549 = vmatmul.f32.gmra.mxu0 %v504
      %v550 = vpop.f32.mrf.mxu0
      %v551 = vadd.f32 0.0, %v550
      %552 = vmatmul.f32.gmra.mxu0 %v507
      %v553 = vpop.f32.mrf.mxu0
      %v554 = vadd.f32 0.0, %v553
      %555 = vmatmul.f32.gmra.mxu0 %v510
      %v556 = vpop.f32.mrf.mxu0
      %v557 = vadd.f32 0.0, %v556
      %558 = vmatmul.f32.gmra.mxu0 %v513
      %v559 = vpop.f32.mrf.mxu0
      %v560 = vadd.f32 0.0, %v559
      %561 = vmatmul.f32.gmra.mxu0 %v516
      %v562 = vpop.f32.mrf.mxu0
      %v563 = vadd.f32 0.0, %v562
      %564 = vmatmul.f32.gmra.mxu0 %v519
      %v565 = vpop.f32.mrf.mxu0
      %v566 = vadd.f32 0.0, %v565
      %567 = vmatmul.f32.gmra.mxu0 %v522
      %v568 = vpop.f32.mrf.mxu0
      %v569 = vadd.f32 0.0, %v568
      %570 = vmatmul.f32.gmra.mxu0 %v525
      %v571 = vpop.f32.mrf.mxu0
      %v572 = vadd.f32 0.0, %v571
      %573 = vdwg.mxu0
      %574 = vmatpush.msra.mxu0 0.0
      %575 = vmatpush.msra.mxu0 0.0
      %576 = vmatpush.msra.mxu0 0.0
      %577 = vmatpush.msra.mxu0 0.0
      %578 = vmatpush.msra.mxu0 0.0
      %579 = vmatpush.msra.mxu0 0.0
      %580 = vmatpush.msra.mxu0 %v484
      %581 = vmatpush.msra.mxu0 %v481
      %582 = vmatpush.msra.mxu0 %v478
      %583 = vmatpush.msra.mxu0 %v475
      %584 = vmatpush.msra.mxu0 %v472
      %585 = vmatpush.msra.mxu0 %v469
      %586 = vmatpush.msra.mxu0 %v466
      %587 = vmatpush.msra.mxu0 %v463
      %588 = vmatpush.msra.mxu0 %v460
      %589 = vmatpush.msra.mxu0 %v457
      %590 = vmatmul.f32.gmra.mxu0 %v498
      %v591 = vpop.f32.mrf.mxu0
      %v592 = vadd.f32 0.0, %v591
      %593 = vmatmul.f32.gmra.mxu0 %v501
      %v594 = vpop.f32.mrf.mxu0
      %v595 = vadd.f32 0.0, %v594
      %596 = vmatmul.f32.gmra.mxu0 %v504
      %v597 = vpop.f32.mrf.mxu0
      %v598 = vadd.f32 0.0, %v597
      %599 = vmatmul.f32.gmra.mxu0 %v507
      %v600 = vpop.f32.mrf.mxu0
      %v601 = vadd.f32 0.0, %v600
      %602 = vmatmul.f32.gmra.mxu0 %v510
      %v603 = vpop.f32.mrf.mxu0
      %v604 = vadd.f32 0.0, %v603
      %605 = vmatmul.f32.gmra.mxu0 %v513
      %v606 = vpop.f32.mrf.mxu0
      %v607 = vadd.f32 0.0, %v606
      %608 = vmatmul.f32.gmra.mxu0 %v516
      %v609 = vpop.f32.mrf.mxu0
      %v610 = vadd.f32 0.0, %v609
      %611 = vmatmul.f32.gmra.mxu0 %v519
      %v612 = vpop.f32.mrf.mxu0
      %v613 = vadd.f32 0.0, %v612
      %614 = vmatmul.f32.gmra.mxu0 %v522
      %v615 = vpop.f32.mrf.mxu0
      %v616 = vadd.f32 0.0, %v615
      %617 = vmatmul.f32.gmra.mxu0 %v525
      %v618 = vpop.f32.mrf.mxu0
      %v619 = vadd.f32 0.0, %v618
      %620 = vdwg.mxu0
      %v621 = vmul.f32 %v545, %v551
      %v622 = vmul.f32 %v592, %v598
      %v623 = vmul.f32 %v548, %v554
      %v624 = vmul.f32 %v595, %v601
      %v625 = vmul.f32 %v621, 0.0013717421
      %v626 = vmul.f32 %v622, 0.0013717421
      %v627 = vmul.f32 %v623, 0.0013717421
      %v628 = vmul.f32 %v624, 0.0013717421
      %v629 = vsub.f32 %v569, %v625
      %v630 = vsub.f32 %v616, %v626
      %v631 = vsub.f32 %v572, %v627
      %v632 = vsub.f32 %v619, %v628
      %v633 = vmul.f32 %v545, %v545
      %v634 = vmul.f32 %v592, %v592
      %v635 = vmul.f32 %v548, %v548
      %v636 = vmul.f32 %v595, %v595
      %v637 = vmul.f32 %v633, 0.0013717421
      %v638 = vmul.f32 %v634, 0.0013717421
      %v639 = vmul.f32 %v635, 0.0013717421
      %v640 = vmul.f32 %v636, 0.0013717421
      %v641 = vsub.f32 %v557, %v637
      %v642 = vsub.f32 %v604, %v638
      %v643 = vsub.f32 %v560, %v639
      %v644 = vsub.f32 %v607, %v640
      %v645 = vmul.f32 %v551, %v551
      %v646 = vmul.f32 %v598, %v598
      %v647 = vmul.f32 %v554, %v554
      %v648 = vmul.f32 %v601, %v601
      %v649 = vmul.f32 %v645, 0.0013717421
      %v650 = vmul.f32 %v646, 0.0013717421
      %v651 = vmul.f32 %v647, 0.0013717421
      %v652 = vmul.f32 %v648, 0.0013717421
      %v653 = vsub.f32 %v563, %v649
      %v654 = vsub.f32 %v610, %v650
      %v655 = vsub.f32 %v566, %v651
      %v656 = vsub.f32 %v613, %v652
      %v657 = vmul.f32 %v629, %v629
      %v658 = vmul.f32 %v630, %v630
      %v659 = vmul.f32 %v631, %v631
      %v660 = vmul.f32 %v632, %v632
      %v661 = vmul.f32 %v641, %v653
      %v662 = vmul.f32 %v642, %v654
      %v663 = vmul.f32 %v643, %v655
      %v664 = vmul.f32 %v644, %v656
      %v665 = vadd.f32 %v661, 1e-05
      %v666 = vadd.f32 %v662, 1e-05
      %v667 = vadd.f32 %v663, 1e-05
      %v668 = vadd.f32 %v664, 1e-05
      %v669 = vrcp.pop %v665
      %v670 = vmul.f32 %v665, %v669
      %v671 = vsub.f32 1.0, %v670
      %v672 = vmul.f32 %v669, %v671
      %v673 = vadd.f32 %v669, %v672
      %vm674 = vweird.f32 %v665
      %vm675 = vweird.f32 %v669
      %vm676 = vmor %vm674, %vm675
      %v677 = vsel %vm676, %v669, %v673
      %v678 = vand.u32 2147483647, %v665
      %vm679 = vcmp.eq.f32.partialorder %v678, 8.507059e+37
      %v680 = vand.u32 %v665, 2147483648
      %v681 = vor.u32 1.1754944e-38, %v680
      %v682 = vsel %vm679, %v681, %v677
      %v683 = vmul.f32 %v657, %v682
      %v684 = vrcp.pop %v666
      %v685 = vmul.f32 %v666, %v684
      %v686 = vsub.f32 1.0, %v685
      %v687 = vmul.f32 %v684, %v686
      %v688 = vadd.f32 %v684, %v687
      %vm689 = vweird.f32 %v666
      %vm690 = vweird.f32 %v684
      %vm691 = vmor %vm689, %vm690
      %v692 = vsel %vm691, %v684, %v688
      %v693 = vand.u32 2147483647, %v666
      %vm694 = vcmp.eq.f32.partialorder %v693, 8.507059e+37
      %v695 = vand.u32 %v666, 2147483648
      %v696 = vor.u32 1.1754944e-38, %v695
      %v697 = vsel %vm694, %v696, %v692
      %v698 = vmul.f32 %v658, %v697
      %v699 = vrcp.pop %v667
      %v700 = vmul.f32 %v667, %v699
      %v701 = vsub.f32 1.0, %v700
      %v702 = vmul.f32 %v699, %v701
      %v703 = vadd.f32 %v699, %v702
      %vm704 = vweird.f32 %v667
      %vm705 = vweird.f32 %v699
      %vm706 = vmor %vm704, %vm705
      %v707 = vsel %vm706, %v699, %v703
      %v708 = vand.u32 2147483647, %v667
      %vm709 = vcmp.eq.f32.partialorder %v708, 8.507059e+37
      %v710 = vand.u32 %v667, 2147483648
      %v711 = vor.u32 1.1754944e-38, %v710
      %v712 = vsel %vm709, %v711, %v707
      %v713 = vmul.f32 %v659, %v712
      %v714 = vrcp.pop %v668
      %v715 = vmul.f32 %v668, %v714
      %v716 = vsub.f32 1.0, %v715
      %v717 = vmul.f32 %v714, %v716
      %v718 = vadd.f32 %v714, %v717
      %vm719 = vweird.f32 %v668
      %vm720 = vweird.f32 %v714
      %vm721 = vmor %vm719, %vm720
      %v722 = vsel %vm721, %v714, %v718
      %v723 = vand.u32 2147483647, %v668
      %vm724 = vcmp.eq.f32.partialorder %v723, 8.507059e+37
      %v725 = vand.u32 %v668, 2147483648
      %v726 = vor.u32 1.1754944e-38, %v725
      %v727 = vsel %vm724, %v726, %v722
      %v728 = vmul.f32 %v660, %v727
      %v729 = vadd.f32 %v683, %v698
      %730 = vadd.xlane.f32.xlu0 %v729
      %v731 = vpop.xlane.xlu0 %730
      %v732 = vadd.f32 %v713, %v728
      %733 = vadd.xlane.f32.xlu0 %v732
      %v734 = vpop.xlane.xlu0 %733
      %v735 = vadd.f32 %v731, %v734
      %v736 = vrot.slane %v735, 4
      %v737 = vadd.f32 %v735, %v736
      %v738 = vrot.slane %v737, 2
      %v739 = vadd.f32 %v737, %v738
      %v740 = vrot.slane %v739, 1
      %v741 = vadd.f32 %v739, %v740
      %vm742 = vcmask 0
      %743 = vst.msk [vmem:[%s213] sm:$0x1] %vm742, %v741
      %p744 = scmp.lt.s32.totalorder %s15, 1
      %s745 = scalar_select %p744, %s15, 1
      %s746 = scalar_lea.vmem %s4, %s745
      // Predicated region
      $region37: #{ncc_pallas.1} parent=35 // pred_check
        %p747 = pneg %p127
      $region38: #{ncc_pallas.1} parent=35 // pred_check_branch
        %749 = sbr.rel (%p747) target = $region40
      $region39: #{ncc_pallas.1} parent=35 // pred_region
        _
      $region40: #{ncc_pallas.1} parent=35 // pred_fallthru
        _
    $region36: #{ncc_pallas.1} parent=5 // pred_fallthru
      _
    %p750 = scmp.le.s32.totalorder 2, %s10
    // Predicated region
    $region41: #{ncc_pallas.1} parent=5 // pred_check
      %p751 = pneg %p750
    $region42: #{ncc_pallas.1} parent=5 // pred_check_branch
      %753 = sbr.rel (%p751) target = $region44
    $region43: #{ncc_pallas.1} parent=5 // pred_region
      %s754 = ssub.s32 %s10, 2
      // Predicated region
      $region45: #{ncc_pallas.1} parent=43 // pred_check
        %p755 = pneg %p133
      $region46: #{ncc_pallas.1} parent=43 // pred_check_branch
        %757 = sbr.rel (%p755) target = $region48
      $region47: #{ncc_pallas.1} parent=43 // pred_region
        %p758 = scmp.lt.s32.totalorder %s16, 1
        %s759 = scalar_select %p758, %s16, 1
        %s760 = scalar_lea.vmem %s4, %s759
      $region48: #{ncc_pallas.1} parent=43 // pred_fallthru
        _
    $region44: #{ncc_pallas.1} parent=5 // pred_fallthru
      _
  $region6: #{ncc_pallas.1} parent=0 // loop_footer
    %s14 = sadd.s32 1, %s10
  $region7: #{ncc_pallas.1} parent=0 // loop_footer_branch
    %9 = sbr.rel target = $region3
  $region8: #{ncc_pallas.1} parent=0 // loop_exit
    _

</llo_original>
